<compile_context>
chip_gen: v5e
topology: v5e:2x2
jax: 0.10.0
libtpu: 0.0.40
codegen_flags: <defaults>
</compile_context>

<pallas_src>
import functools

import jax
import jax.numpy as jnp
from jax.experimental import pallas as pl
from jax.experimental.pallas import tpu as pltpu


def _round_up(x, m):
    return (x + m - 1) // m * m


# ----------------------------------------------------------------------------
# One fused kernel invocation per batch element.
#   zc_ref : (1, ZROWS, 9*Cin)  bf16   im2col of the template (conv_kernel in)
#   xc_ref : (1, XROWS, 9*Cin)  bf16   im2col of the search   (conv_search in)
#   wk/ws  : (9*Cin, hid)       bf16   conv weights with BN scale folded in
#   bk/bs  : (1, hid)           f32    BN shifts
#   w1     : (hid, hid)         bf16   head 1x1 conv (BN scale folded)
#   b1     : (1, hid)           f32    head BN shift
#   w2     : (hid, 128)         bf16   head 1x1 conv, Cout zero-padded to 128
#   b2     : (1, 128)           f32    head bias, zero-padded
#   o_ref  : (1, OUT_ROWS, 128) f32    lane-dense output slab
#   zk_ref : (ZROWS, hid) f32 VMEM scratch (template features)
#   xs_ref : (XROWS, hid) f32 VMEM scratch (search features, flat grid)
# ----------------------------------------------------------------------------
def _fused_kernel(zc_ref, xc_ref, wk_ref, bk_ref, ws_ref, bs_ref,
                  w1_ref, b1_ref, w2_ref, b2_ref, o_ref,
                  zk_ref, xs_ref, *, hzf, wzf, wxf, out_rows):
    # --- conv_kernel branch: single im2col matmul + BN shift + ReLU -------
    zk = jnp.dot(zc_ref[0], wk_ref[...], preferred_element_type=jnp.float32)
    zk_ref[...] = jnp.maximum(zk + bk_ref[...], 0.0)

    # --- conv_search branch -------------------------------------------------
    xs = jnp.dot(xc_ref[0], ws_ref[...], preferred_element_type=jnp.float32)
    xs_ref[...] = jnp.maximum(xs + bs_ref[...], 0.0)

    # --- depthwise cross-correlation ---------------------------------------
    # Search feature stays flat (row index = i*wxf + j); each of the hzf*wzf
    # taps is a leading-axis slice of the scratch ref, so no W-axis value
    # slicing happens per tap.  Rows whose flat column index >= Wo (and rows
    # >= Ho*wxf) are garbage and are discarded by the wrapper.
    hid = zk_ref.shape[1]
    acc = jnp.zeros((out_rows, hid), jnp.float32)
    for di in range(hzf):
        for dj in range(wzf):
            off = di * wxf + dj
            tap = xs_ref[pl.ds(off, out_rows), :]          # (out_rows, hid) f32
            zrow = zk_ref[pl.ds(di * wzf + dj, 1), :]      # (1, hid) f32
            acc = acc + tap * zrow

    # --- head: 1x1 conv + BN shift + ReLU, then 1x1 conv + bias ------------
    h = jnp.dot(acc.astype(jnp.bfloat16), w1_ref[...],
                preferred_element_type=jnp.float32)
    h = jnp.maximum(h + b1_ref[...], 0.0)
    out = jnp.dot(h.astype(jnp.bfloat16), w2_ref[...],
                  preferred_element_type=jnp.float32)
    o_ref[0] = out + b2_ref[...]                           # lane-dense store


# ----------------------------------------------------------------------------
# Plain-JAX glue (layout plumbing only): NCHW<->NHWC, im2col, BN fold, padding.
# ----------------------------------------------------------------------------
def _im2col(x_nhwc, kh, kw):
    B, H, W, C = x_nhwc.shape
    Ho, Wo = H - kh + 1, W - kw + 1
    cols = [x_nhwc[:, dy:dy + Ho, dx:dx + Wo, :]
            for dy in range(kh) for dx in range(kw)]
    return jnp.concatenate(cols, axis=-1).reshape(B, Ho * Wo, kh * kw * C)


def fold_bn(gamma, beta, mean, var, eps=1e-5):
    scale = gamma / jnp.sqrt(var + eps)
    shift = beta - mean * scale
    return scale.reshape(1, -1), shift.reshape(1, -1)


def depthwise_xcorr_forward(kernel_nchw, search_nchw, p):
    """DepthwiseXCorr.forward (TRANS=False) as one fused Pallas TPU kernel."""
    # TODO(synk): TRANS=True branch (Trans/CalTrans with learned V/U lists and
    # cfg.SIAMF.* hyperparams) is stateful/config-dependent and not implemented.
    z = jnp.transpose(kernel_nchw, (0, 2, 3, 1))   # NCHW -> NHWC
    x = jnp.transpose(search_nchw, (0, 2, 3, 1))

    B, Hz, Wz, Cin = z.shape
    _, Hx, Wx, _ = x.shape
    kh, kw, _, hid = p["wk"].shape
    out_ch = p["w2"].shape[-1]

    hzf, wzf = Hz - kh + 1, Wz - kw + 1     # template feature grid
    hxf, wxf = Hx - kh + 1, Wx - kw + 1     # search feature grid
    ho, wo = hxf - hzf + 1, wxf - wzf + 1   # xcorr / head output grid

    kf = kh * kw * Cin                               # im2col contraction depth
    out_rows = _round_up(ho * wxf, 8)                # flat rows computed by head
    xcol_rows = _round_up((hzf - 1) * wxf + (wzf - 1) + out_rows, 8)
    zcol_rows = _round_up(hzf * wzf, 8)
    cout_pad = _round_up(out_ch, 128)                # lane-dense output stores

    # im2col patch matrices (wrapper-side layout plumbing), zero-padded on the
    # row axis so the kernel only takes in-range leading-axis slices.
    z_col = _im2col(z, kh, kw)
    x_col = _im2col(x, kh, kw)
    z_col = jnp.pad(z_col, ((0, 0), (0, zcol_rows - z_col.shape[1]), (0, 0)))
    x_col = jnp.pad(x_col, ((0, 0), (0, xcol_rows - x_col.shape[1]), (0, 0)))
    z_col = z_col.astype(jnp.bfloat16)
    x_col = x_col.astype(jnp.bfloat16)

    # Fold BN scale into the conv / 1x1 weights; only shift + ReLU in-kernel.
    wk = (p["wk"].reshape(kf, hid) * p["sk"]).astype(jnp.bfloat16)
    ws = (p["ws"].reshape(kf, hid) * p["ss"]).astype(jnp.bfloat16)
    w1 = (p["w1"] * p["s1"]).astype(jnp.bfloat16)
    w2 = jnp.zeros((hid, cout_pad), jnp.float32).at[:, :out_ch].set(p["w2"])
    w2 = w2.astype(jnp.bfloat16)
    b2 = jnp.zeros((1, cout_pad), jnp.float32).at[:, :out_ch].set(p["bias2"])

    # Advisory cost estimate (helps XLA schedule the surrounding transposes).
    flops = 2 * B * (zcol_rows * kf * hid + xcol_rows * kf * hid
                     + out_rows * hzf * wzf * hid
                     + out_rows * hid * hid + out_rows * hid * cout_pad)
    bytes_accessed = int(
        (z_col.size + x_col.size + wk.size + ws.size + w1.size + w2.size) * 2
        + (p["bk"].size + p["bs"].size + p["b1"].size + b2.size) * 4
        + B * out_rows * cout_pad * 4)

    kernel = functools.partial(_fused_kernel, hzf=hzf, wzf=wzf, wxf=wxf,
                               out_rows=out_rows)

    out_slab = pl.pallas_call(
        kernel,
        out_shape=jax.ShapeDtypeStruct((B, out_rows, cout_pad), jnp.float32),
        grid=(B,),
        in_specs=[
            pl.BlockSpec((1, zcol_rows, kf), lambda b: (b, 0, 0)),
            pl.BlockSpec((1, xcol_rows, kf), lambda b: (b, 0, 0)),
            pl.BlockSpec((kf, hid), lambda b: (0, 0)),
            pl.BlockSpec((1, hid), lambda b: (0, 0)),
            pl.BlockSpec((kf, hid), lambda b: (0, 0)),
            pl.BlockSpec((1, hid), lambda b: (0, 0)),
            pl.BlockSpec((hid, hid), lambda b: (0, 0)),
            pl.BlockSpec((1, hid), lambda b: (0, 0)),
            pl.BlockSpec((hid, cout_pad), lambda b: (0, 0)),
            pl.BlockSpec((1, cout_pad), lambda b: (0, 0)),
        ],
        out_specs=pl.BlockSpec((1, out_rows, cout_pad), lambda b: (b, 0, 0)),
        scratch_shapes=[
            pltpu.VMEM((zcol_rows, hid), jnp.float32),   # template features
            pltpu.VMEM((xcol_rows, hid), jnp.float32),   # search features
        ],
        compiler_params=pltpu.CompilerParams(
            dimension_semantics=("parallel",)),
        cost_estimate=pl.CostEstimate(flops=flops, transcendentals=0,
                                      bytes_accessed=bytes_accessed),
    )(z_col, x_col, wk, p["bk"], ws, p["bs"], w1, p["b1"], w2, b2)

    # Strip the row/column/channel padding and restore NCHW.
    out = out_slab[:, :ho * wxf, :].reshape(B, ho, wxf, cout_pad)
    out = out[:, :, :wo, :out_ch]
    return jnp.transpose(out, (0, 3, 1, 2))


if __name__ == "__main__":
    key = jax.random.PRNGKey(0)
    ks = jax.random.split(key, 12)

    in_channels, hidden, out_channels = 4, 32, 8
    B = 2
    # template (kernel) 7x7, search 15x15 -> feats 5x5 / 13x13 -> xcorr 9x9
    z_nchw = jax.random.normal(ks[0], (B, in_channels, 7, 7), jnp.float32)
    x_nchw = jax.random.normal(ks[1], (B, in_channels, 15, 15), jnp.float32)

    def init_bn(k, c):
        k1, k2, k3, k4 = jax.random.split(k, 4)
        gamma = 1.0 + 0.1 * jax.random.normal(k1, (c,), jnp.float32)
        beta = 0.1 * jax.random.normal(k2, (c,), jnp.float32)
        mean = 0.1 * jax.random.normal(k3, (c,), jnp.float32)
        var = jnp.abs(jax.random.normal(k4, (c,), jnp.float32)) + 0.5
        return fold_bn(gamma, beta, mean, var)

    sk, bk = init_bn(ks[4], hidden)
    ss, bs = init_bn(ks[5], hidden)
    s1, b1 = init_bn(ks[7], hidden)

    params = {
        # conv weights stored HWIO (kh, kw, Cin, Cout)
        "wk": 0.1 * jax.random.normal(ks[2], (3, 3, in_channels, hidden), jnp.float32),
        "ws": 0.1 * jax.random.normal(ks[3], (3, 3, in_channels, hidden), jnp.float32),
        "sk": sk, "bk": bk,
        "ss": ss, "bs": bs,
        "w1": 0.1 * jax.random.normal(ks[6], (hidden, hidden), jnp.float32),
        "s1": s1, "b1": b1,
        "w2": 0.1 * jax.random.normal(ks[8], (hidden, out_channels), jnp.float32),
        "bias2": 0.1 * jax.random.normal(ks[9], (1, out_channels), jnp.float32),
    }

    fwd = jax.jit(depthwise_xcorr_forward)
    out = fwd(z_nchw, x_nchw, params)
    out = jax.block_until_ready(out)
    assert out.shape == (B, out_channels, 9, 9), out.shape
    assert bool(jnp.all(jnp.isfinite(out)))
    print("KERNEL_OK")
</pallas_src>

<mosaic_0001>
module attributes {stable_mosaic.version = 11 : i64} {
  func.func @_fused_kernel(%arg0: i32, %arg1: memref<1x32x36xbf16, #tpu.memory_space<vmem>>, %arg2: memref<1x176x36xbf16, #tpu.memory_space<vmem>>, %arg3: memref<36x32xbf16, #tpu.memory_space<vmem>>, %arg4: memref<1x32xf32, #tpu.memory_space<vmem>>, %arg5: memref<36x32xbf16, #tpu.memory_space<vmem>>, %arg6: memref<1x32xf32, #tpu.memory_space<vmem>>, %arg7: memref<32x32xbf16, #tpu.memory_space<vmem>>, %arg8: memref<1x32xf32, #tpu.memory_space<vmem>>, %arg9: memref<32x128xbf16, #tpu.memory_space<vmem>>, %arg10: memref<1x128xf32, #tpu.memory_space<vmem>>, %arg11: memref<1x120x128xf32, #tpu.memory_space<vmem>>, %arg12: memref<32x32xf32, #tpu.memory_space<vmem>>, %arg13: memref<176x32xf32, #tpu.memory_space<vmem>>) attributes {dimension_semantics = [#tpu.dimension_semantics<parallel>], iteration_bounds = array<i64: 2>, scalar_prefetch = 0 : i64, scratch_operands = 2 : i64, tpu.core_type = #tpu.core_type<tc>, window_params = [{transform_indices = @transform_0, window_bounds = array<i64: 1, 32, 36>}, {transform_indices = @transform_1, window_bounds = array<i64: 1, 176, 36>}, {pipeline_mode = #tpu.pipeline_mode<synchronous>, transform_indices = @transform_2, window_bounds = array<i64: 36, 32>}, {pipeline_mode = #tpu.pipeline_mode<synchronous>, transform_indices = @transform_3, window_bounds = array<i64: 1, 32>}, {pipeline_mode = #tpu.pipeline_mode<synchronous>, transform_indices = @transform_4, window_bounds = array<i64: 36, 32>}, {pipeline_mode = #tpu.pipeline_mode<synchronous>, transform_indices = @transform_5, window_bounds = array<i64: 1, 32>}, {pipeline_mode = #tpu.pipeline_mode<synchronous>, transform_indices = @transform_6, window_bounds = array<i64: 32, 32>}, {pipeline_mode = #tpu.pipeline_mode<synchronous>, transform_indices = @transform_7, window_bounds = array<i64: 1, 32>}, {pipeline_mode = #tpu.pipeline_mode<synchronous>, transform_indices = @transform_8, window_bounds = array<i64: 32, 128>}, {pipeline_mode = #tpu.pipeline_mode<synchronous>, transform_indices = @transform_9, window_bounds = array<i64: 1, 128>}, {transform_indices = @transform_10, window_bounds = array<i64: 1, 120, 128>}]} {
    %c0 = arith.constant 0 : index
    %c0_0 = arith.constant 0 : index
    %c0_1 = arith.constant 0 : index
    %0 = vector.load %arg1[%c0, %c0_0, %c0_1] : memref<1x32x36xbf16, #tpu.memory_space<vmem>>, vector<1x32x36xbf16>
    %1 = vector.shape_cast %0 : vector<1x32x36xbf16> to vector<32x36xbf16>
    %c0_2 = arith.constant 0 : index
    %c0_3 = arith.constant 0 : index
    %2 = vector.load %arg3[%c0_2, %c0_3] : memref<36x32xbf16, #tpu.memory_space<vmem>>, vector<36x32xbf16>
    %cst = arith.constant dense<0.000000e+00> : vector<32x32xf32>
    %3 = tpu.matmul %1, %2, %cst {dimension_numbers = #tpu.dot_dimension_numbers<[1], [0], [0], [1], [0, 0, 1, 1], [], []>} : vector<32x36xbf16>, vector<36x32xbf16>, vector<32x32xf32> -> vector<32x32xf32>
    %c0_4 = arith.constant 0 : index
    %c0_5 = arith.constant 0 : index
    %4 = vector.load %arg4[%c0_4, %c0_5] : memref<1x32xf32, #tpu.memory_space<vmem>>, vector<1x32xf32>
    %5 = vector.broadcast %4 : vector<1x32xf32> to vector<32x32xf32>
    %6 = arith.addf %3, %5 : vector<32x32xf32>
    %cst_6 = arith.constant 0.000000e+00 : f32
    %7 = vector.broadcast %cst_6 : f32 to vector<32x32xf32>
    %8 = arith.maximumf %6, %7 : vector<32x32xf32>
    %c0_7 = arith.constant 0 : index
    %c0_8 = arith.constant 0 : index
    %9 = vector.load %arg12[%c0_7, %c0_8] : memref<32x32xf32, #tpu.memory_space<vmem>>, vector<32x32xf32>
    tpu.vector_store %arg12[%c0_7, %c0_8], %8 {strides = array<i32>} : memref<32x32xf32, #tpu.memory_space<vmem>>, vector<32x32xf32>,
    %c0_9 = arith.constant 0 : index
    %c0_10 = arith.constant 0 : index
    %c0_11 = arith.constant 0 : index
    %10 = vector.load %arg2[%c0_9, %c0_10, %c0_11] : memref<1x176x36xbf16, #tpu.memory_space<vmem>>, vector<1x176x36xbf16>
    %11 = vector.shape_cast %10 : vector<1x176x36xbf16> to vector<176x36xbf16>
    %c0_12 = arith.constant 0 : index
    %c0_13 = arith.constant 0 : index
    %12 = vector.load %arg5[%c0_12, %c0_13] : memref<36x32xbf16, #tpu.memory_space<vmem>>, vector<36x32xbf16>
    %cst_14 = arith.constant dense<0.000000e+00> : vector<176x32xf32>
    %13 = tpu.matmul %11, %12, %cst_14 {dimension_numbers = #tpu.dot_dimension_numbers<[1], [0], [0], [1], [0, 0, 1, 1], [], []>} : vector<176x36xbf16>, vector<36x32xbf16>, vector<176x32xf32> -> vector<176x32xf32>
    %c0_15 = arith.constant 0 : index
    %c0_16 = arith.constant 0 : index
    %14 = vector.load %arg6[%c0_15, %c0_16] : memref<1x32xf32, #tpu.memory_space<vmem>>, vector<1x32xf32>
    %15 = vector.broadcast %14 : vector<1x32xf32> to vector<176x32xf32>
    %16 = arith.addf %13, %15 : vector<176x32xf32>
    %cst_17 = arith.constant 0.000000e+00 : f32
    %17 = vector.broadcast %cst_17 : f32 to vector<176x32xf32>
    %18 = arith.maximumf %16, %17 : vector<176x32xf32>
    %c0_18 = arith.constant 0 : index
    %c0_19 = arith.constant 0 : index
    %19 = vector.load %arg13[%c0_18, %c0_19] : memref<176x32xf32, #tpu.memory_space<vmem>>, vector<176x32xf32>
    tpu.vector_store %arg13[%c0_18, %c0_19], %18 {strides = array<i32>} : memref<176x32xf32, #tpu.memory_space<vmem>>, vector<176x32xf32>,
    %cst_20 = arith.constant 0.000000e+00 : f32
    %20 = vector.broadcast %cst_20 : f32 to vector<120x32xf32>
    %c0_21 = arith.constant 0 : index
    %c0_22 = arith.constant 0 : index
    %21 = vector.load %arg13[%c0_21, %c0_22] : memref<176x32xf32, #tpu.memory_space<vmem>>, vector<120x32xf32>
    %c0_23 = arith.constant 0 : index
    %c0_24 = arith.constant 0 : index
    %22 = vector.load %arg12[%c0_23, %c0_24] : memref<32x32xf32, #tpu.memory_space<vmem>>, vector<1x32xf32>
    %23 = vector.broadcast %22 : vector<1x32xf32> to vector<120x32xf32>
    %24 = arith.mulf %21, %23 : vector<120x32xf32>
    %25 = arith.addf %20, %24 : vector<120x32xf32>
    %c1 = arith.constant 1 : index
    %c0_25 = arith.constant 0 : index
    %26 = vector.load %arg13[%c1, %c0_25] : memref<176x32xf32, #tpu.memory_space<vmem>>, vector<120x32xf32>
    %c1_26 = arith.constant 1 : index
    %c0_27 = arith.constant 0 : index
    %27 = vector.load %arg12[%c1_26, %c0_27] : memref<32x32xf32, #tpu.memory_space<vmem>>, vector<1x32xf32>
    %28 = vector.broadcast %27 : vector<1x32xf32> to vector<120x32xf32>
    %29 = arith.mulf %26, %28 : vector<120x32xf32>
    %30 = arith.addf %25, %29 : vector<120x32xf32>
    %c2 = arith.constant 2 : index
    %c0_28 = arith.constant 0 : index
    %31 = vector.load %arg13[%c2, %c0_28] : memref<176x32xf32, #tpu.memory_space<vmem>>, vector<120x32xf32>
    %c2_29 = arith.constant 2 : index
    %c0_30 = arith.constant 0 : index
    %32 = vector.load %arg12[%c2_29, %c0_30] : memref<32x32xf32, #tpu.memory_space<vmem>>, vector<1x32xf32>
    %33 = vector.broadcast %32 : vector<1x32xf32> to vector<120x32xf32>
    %34 = arith.mulf %31, %33 : vector<120x32xf32>
    %35 = arith.addf %30, %34 : vector<120x32xf32>
    %c3 = arith.constant 3 : index
    %c0_31 = arith.constant 0 : index
    %36 = vector.load %arg13[%c3, %c0_31] : memref<176x32xf32, #tpu.memory_space<vmem>>, vector<120x32xf32>
    %c3_32 = arith.constant 3 : index
    %c0_33 = arith.constant 0 : index
    %37 = vector.load %arg12[%c3_32, %c0_33] : memref<32x32xf32, #tpu.memory_space<vmem>>, vector<1x32xf32>
    %38 = vector.broadcast %37 : vector<1x32xf32> to vector<120x32xf32>
    %39 = arith.mulf %36, %38 : vector<120x32xf32>
    %40 = arith.addf %35, %39 : vector<120x32xf32>
    %c4 = arith.constant 4 : index
    %c0_34 = arith.constant 0 : index
    %41 = vector.load %arg13[%c4, %c0_34] : memref<176x32xf32, #tpu.memory_space<vmem>>, vector<120x32xf32>
    %c4_35 = arith.constant 4 : index
    %c0_36 = arith.constant 0 : index
    %42 = vector.load %arg12[%c4_35, %c0_36] : memref<32x32xf32, #tpu.memory_space<vmem>>, vector<1x32xf32>
    %43 = vector.broadcast %42 : vector<1x32xf32> to vector<120x32xf32>
    %44 = arith.mulf %41, %43 : vector<120x32xf32>
    %45 = arith.addf %40, %44 : vector<120x32xf32>
    %c13 = arith.constant 13 : index
    %c0_37 = arith.constant 0 : index
    %46 = vector.load %arg13[%c13, %c0_37] : memref<176x32xf32, #tpu.memory_space<vmem>>, vector<120x32xf32>
    %c5 = arith.constant 5 : index
    %c0_38 = arith.constant 0 : index
    %47 = vector.load %arg12[%c5, %c0_38] : memref<32x32xf32, #tpu.memory_space<vmem>>, vector<1x32xf32>
    %48 = vector.broadcast %47 : vector<1x32xf32> to vector<120x32xf32>
    %49 = arith.mulf %46, %48 : vector<120x32xf32>
    %50 = arith.addf %45, %49 : vector<120x32xf32>
    %c14 = arith.constant 14 : index
    %c0_39 = arith.constant 0 : index
    %51 = vector.load %arg13[%c14, %c0_39] : memref<176x32xf32, #tpu.memory_space<vmem>>, vector<120x32xf32>
    %c6 = arith.constant 6 : index
    %c0_40 = arith.constant 0 : index
    %52 = vector.load %arg12[%c6, %c0_40] : memref<32x32xf32, #tpu.memory_space<vmem>>, vector<1x32xf32>
    %53 = vector.broadcast %52 : vector<1x32xf32> to vector<120x32xf32>
    %54 = arith.mulf %51, %53 : vector<120x32xf32>
    %55 = arith.addf %50, %54 : vector<120x32xf32>
    %c15 = arith.constant 15 : index
    %c0_41 = arith.constant 0 : index
    %56 = vector.load %arg13[%c15, %c0_41] : memref<176x32xf32, #tpu.memory_space<vmem>>, vector<120x32xf32>
    %c7 = arith.constant 7 : index
    %c0_42 = arith.constant 0 : index
    %57 = vector.load %arg12[%c7, %c0_42] : memref<32x32xf32, #tpu.memory_space<vmem>>, vector<1x32xf32>
    %58 = vector.broadcast %57 : vector<1x32xf32> to vector<120x32xf32>
    %59 = arith.mulf %56, %58 : vector<120x32xf32>
    %60 = arith.addf %55, %59 : vector<120x32xf32>
    %c16 = arith.constant 16 : index
    %c0_43 = arith.constant 0 : index
    %61 = vector.load %arg13[%c16, %c0_43] : memref<176x32xf32, #tpu.memory_space<vmem>>, vector<120x32xf32>
    %c8 = arith.constant 8 : index
    %c0_44 = arith.constant 0 : index
    %62 = vector.load %arg12[%c8, %c0_44] : memref<32x32xf32, #tpu.memory_space<vmem>>, vector<1x32xf32>
    %63 = vector.broadcast %62 : vector<1x32xf32> to vector<120x32xf32>
    %64 = arith.mulf %61, %63 : vector<120x32xf32>
    %65 = arith.addf %60, %64 : vector<120x32xf32>
    %c17 = arith.constant 17 : index
    %c0_45 = arith.constant 0 : index
    %66 = vector.load %arg13[%c17, %c0_45] : memref<176x32xf32, #tpu.memory_space<vmem>>, vector<120x32xf32>
    %c9 = arith.constant 9 : index
    %c0_46 = arith.constant 0 : index
    %67 = vector.load %arg12[%c9, %c0_46] : memref<32x32xf32, #tpu.memory_space<vmem>>, vector<1x32xf32>
    %68 = vector.broadcast %67 : vector<1x32xf32> to vector<120x32xf32>
    %69 = arith.mulf %66, %68 : vector<120x32xf32>
    %70 = arith.addf %65, %69 : vector<120x32xf32>
    %c26 = arith.constant 26 : index
    %c0_47 = arith.constant 0 : index
    %71 = vector.load %arg13[%c26, %c0_47] : memref<176x32xf32, #tpu.memory_space<vmem>>, vector<120x32xf32>
    %c10 = arith.constant 10 : index
    %c0_48 = arith.constant 0 : index
    %72 = vector.load %arg12[%c10, %c0_48] : memref<32x32xf32, #tpu.memory_space<vmem>>, vector<1x32xf32>
    %73 = vector.broadcast %72 : vector<1x32xf32> to vector<120x32xf32>
    %74 = arith.mulf %71, %73 : vector<120x32xf32>
    %75 = arith.addf %70, %74 : vector<120x32xf32>
    %c27 = arith.constant 27 : index
    %c0_49 = arith.constant 0 : index
    %76 = vector.load %arg13[%c27, %c0_49] : memref<176x32xf32, #tpu.memory_space<vmem>>, vector<120x32xf32>
    %c11 = arith.constant 11 : index
    %c0_50 = arith.constant 0 : index
    %77 = vector.load %arg12[%c11, %c0_50] : memref<32x32xf32, #tpu.memory_space<vmem>>, vector<1x32xf32>
    %78 = vector.broadcast %77 : vector<1x32xf32> to vector<120x32xf32>
    %79 = arith.mulf %76, %78 : vector<120x32xf32>
    %80 = arith.addf %75, %79 : vector<120x32xf32>
    %c28 = arith.constant 28 : index
    %c0_51 = arith.constant 0 : index
    %81 = vector.load %arg13[%c28, %c0_51] : memref<176x32xf32, #tpu.memory_space<vmem>>, vector<120x32xf32>
    %c12 = arith.constant 12 : index
    %c0_52 = arith.constant 0 : index
    %82 = vector.load %arg12[%c12, %c0_52] : memref<32x32xf32, #tpu.memory_space<vmem>>, vector<1x32xf32>
    %83 = vector.broadcast %82 : vector<1x32xf32> to vector<120x32xf32>
    %84 = arith.mulf %81, %83 : vector<120x32xf32>
    %85 = arith.addf %80, %84 : vector<120x32xf32>
    %c29 = arith.constant 29 : index
    %c0_53 = arith.constant 0 : index
    %86 = vector.load %arg13[%c29, %c0_53] : memref<176x32xf32, #tpu.memory_space<vmem>>, vector<120x32xf32>
    %c13_54 = arith.constant 13 : index
    %c0_55 = arith.constant 0 : index
    %87 = vector.load %arg12[%c13_54, %c0_55] : memref<32x32xf32, #tpu.memory_space<vmem>>, vector<1x32xf32>
    %88 = vector.broadcast %87 : vector<1x32xf32> to vector<120x32xf32>
    %89 = arith.mulf %86, %88 : vector<120x32xf32>
    %90 = arith.addf %85, %89 : vector<120x32xf32>
    %c30 = arith.constant 30 : index
    %c0_56 = arith.constant 0 : index
    %91 = vector.load %arg13[%c30, %c0_56] : memref<176x32xf32, #tpu.memory_space<vmem>>, vector<120x32xf32>
    %c14_57 = arith.constant 14 : index
    %c0_58 = arith.constant 0 : index
    %92 = vector.load %arg12[%c14_57, %c0_58] : memref<32x32xf32, #tpu.memory_space<vmem>>, vector<1x32xf32>
    %93 = vector.broadcast %92 : vector<1x32xf32> to vector<120x32xf32>
    %94 = arith.mulf %91, %93 : vector<120x32xf32>
    %95 = arith.addf %90, %94 : vector<120x32xf32>
    %c39 = arith.constant 39 : index
    %c0_59 = arith.constant 0 : index
    %96 = vector.load %arg13[%c39, %c0_59] : memref<176x32xf32, #tpu.memory_space<vmem>>, vector<120x32xf32>
    %c15_60 = arith.constant 15 : index
    %c0_61 = arith.constant 0 : index
    %97 = vector.load %arg12[%c15_60, %c0_61] : memref<32x32xf32, #tpu.memory_space<vmem>>, vector<1x32xf32>
    %98 = vector.broadcast %97 : vector<1x32xf32> to vector<120x32xf32>
    %99 = arith.mulf %96, %98 : vector<120x32xf32>
    %100 = arith.addf %95, %99 : vector<120x32xf32>
    %c40 = arith.constant 40 : index
    %c0_62 = arith.constant 0 : index
    %101 = vector.load %arg13[%c40, %c0_62] : memref<176x32xf32, #tpu.memory_space<vmem>>, vector<120x32xf32>
    %c16_63 = arith.constant 16 : index
    %c0_64 = arith.constant 0 : index
    %102 = vector.load %arg12[%c16_63, %c0_64] : memref<32x32xf32, #tpu.memory_space<vmem>>, vector<1x32xf32>
    %103 = vector.broadcast %102 : vector<1x32xf32> to vector<120x32xf32>
    %104 = arith.mulf %101, %103 : vector<120x32xf32>
    %105 = arith.addf %100, %104 : vector<120x32xf32>
    %c41 = arith.constant 41 : index
    %c0_65 = arith.constant 0 : index
    %106 = vector.load %arg13[%c41, %c0_65] : memref<176x32xf32, #tpu.memory_space<vmem>>, vector<120x32xf32>
    %c17_66 = arith.constant 17 : index
    %c0_67 = arith.constant 0 : index
    %107 = vector.load %arg12[%c17_66, %c0_67] : memref<32x32xf32, #tpu.memory_space<vmem>>, vector<1x32xf32>
    %108 = vector.broadcast %107 : vector<1x32xf32> to vector<120x32xf32>
    %109 = arith.mulf %106, %108 : vector<120x32xf32>
    %110 = arith.addf %105, %109 : vector<120x32xf32>
    %c42 = arith.constant 42 : index
    %c0_68 = arith.constant 0 : index
    %111 = vector.load %arg13[%c42, %c0_68] : memref<176x32xf32, #tpu.memory_space<vmem>>, vector<120x32xf32>
    %c18 = arith.constant 18 : index
    %c0_69 = arith.constant 0 : index
    %112 = vector.load %arg12[%c18, %c0_69] : memref<32x32xf32, #tpu.memory_space<vmem>>, vector<1x32xf32>
    %113 = vector.broadcast %112 : vector<1x32xf32> to vector<120x32xf32>
    %114 = arith.mulf %111, %113 : vector<120x32xf32>
    %115 = arith.addf %110, %114 : vector<120x32xf32>
    %c43 = arith.constant 43 : index
    %c0_70 = arith.constant 0 : index
    %116 = vector.load %arg13[%c43, %c0_70] : memref<176x32xf32, #tpu.memory_space<vmem>>, vector<120x32xf32>
    %c19 = arith.constant 19 : index
    %c0_71 = arith.constant 0 : index
    %117 = vector.load %arg12[%c19, %c0_71] : memref<32x32xf32, #tpu.memory_space<vmem>>, vector<1x32xf32>
    %118 = vector.broadcast %117 : vector<1x32xf32> to vector<120x32xf32>
    %119 = arith.mulf %116, %118 : vector<120x32xf32>
    %120 = arith.addf %115, %119 : vector<120x32xf32>
    %c52 = arith.constant 52 : index
    %c0_72 = arith.constant 0 : index
    %121 = vector.load %arg13[%c52, %c0_72] : memref<176x32xf32, #tpu.memory_space<vmem>>, vector<120x32xf32>
    %c20 = arith.constant 20 : index
    %c0_73 = arith.constant 0 : index
    %122 = vector.load %arg12[%c20, %c0_73] : memref<32x32xf32, #tpu.memory_space<vmem>>, vector<1x32xf32>
    %123 = vector.broadcast %122 : vector<1x32xf32> to vector<120x32xf32>
    %124 = arith.mulf %121, %123 : vector<120x32xf32>
    %125 = arith.addf %120, %124 : vector<120x32xf32>
    %c53 = arith.constant 53 : index
    %c0_74 = arith.constant 0 : index
    %126 = vector.load %arg13[%c53, %c0_74] : memref<176x32xf32, #tpu.memory_space<vmem>>, vector<120x32xf32>
    %c21 = arith.constant 21 : index
    %c0_75 = arith.constant 0 : index
    %127 = vector.load %arg12[%c21, %c0_75] : memref<32x32xf32, #tpu.memory_space<vmem>>, vector<1x32xf32>
    %128 = vector.broadcast %127 : vector<1x32xf32> to vector<120x32xf32>
    %129 = arith.mulf %126, %128 : vector<120x32xf32>
    %130 = arith.addf %125, %129 : vector<120x32xf32>
    %c54 = arith.constant 54 : index
    %c0_76 = arith.constant 0 : index
    %131 = vector.load %arg13[%c54, %c0_76] : memref<176x32xf32, #tpu.memory_space<vmem>>, vector<120x32xf32>
    %c22 = arith.constant 22 : index
    %c0_77 = arith.constant 0 : index
    %132 = vector.load %arg12[%c22, %c0_77] : memref<32x32xf32, #tpu.memory_space<vmem>>, vector<1x32xf32>
    %133 = vector.broadcast %132 : vector<1x32xf32> to vector<120x32xf32>
    %134 = arith.mulf %131, %133 : vector<120x32xf32>
    %135 = arith.addf %130, %134 : vector<120x32xf32>
    %c55 = arith.constant 55 : index
    %c0_78 = arith.constant 0 : index
    %136 = vector.load %arg13[%c55, %c0_78] : memref<176x32xf32, #tpu.memory_space<vmem>>, vector<120x32xf32>
    %c23 = arith.constant 23 : index
    %c0_79 = arith.constant 0 : index
    %137 = vector.load %arg12[%c23, %c0_79] : memref<32x32xf32, #tpu.memory_space<vmem>>, vector<1x32xf32>
    %138 = vector.broadcast %137 : vector<1x32xf32> to vector<120x32xf32>
    %139 = arith.mulf %136, %138 : vector<120x32xf32>
    %140 = arith.addf %135, %139 : vector<120x32xf32>
    %c56 = arith.constant 56 : index
    %c0_80 = arith.constant 0 : index
    %141 = vector.load %arg13[%c56, %c0_80] : memref<176x32xf32, #tpu.memory_space<vmem>>, vector<120x32xf32>
    %c24 = arith.constant 24 : index
    %c0_81 = arith.constant 0 : index
    %142 = vector.load %arg12[%c24, %c0_81] : memref<32x32xf32, #tpu.memory_space<vmem>>, vector<1x32xf32>
    %143 = vector.broadcast %142 : vector<1x32xf32> to vector<120x32xf32>
    %144 = arith.mulf %141, %143 : vector<120x32xf32>
    %145 = arith.addf %140, %144 : vector<120x32xf32>
    %146 = arith.truncf %145 : vector<120x32xf32> to vector<120x32xbf16>
    %c0_82 = arith.constant 0 : index
    %c0_83 = arith.constant 0 : index
    %147 = vector.load %arg7[%c0_82, %c0_83] : memref<32x32xbf16, #tpu.memory_space<vmem>>, vector<32x32xbf16>
    %cst_84 = arith.constant dense<0.000000e+00> : vector<120x32xf32>
    %148 = tpu.matmul %146, %147, %cst_84 {dimension_numbers = #tpu.dot_dimension_numbers<[1], [0], [0], [1], [0, 0, 1, 1], [], []>} : vector<120x32xbf16>, vector<32x32xbf16>, vector<120x32xf32> -> vector<120x32xf32>
    %c0_85 = arith.constant 0 : index
    %c0_86 = arith.constant 0 : index
    %149 = vector.load %arg8[%c0_85, %c0_86] : memref<1x32xf32, #tpu.memory_space<vmem>>, vector<1x32xf32>
    %150 = vector.broadcast %149 : vector<1x32xf32> to vector<120x32xf32>
    %151 = arith.addf %148, %150 : vector<120x32xf32>
    %cst_87 = arith.constant 0.000000e+00 : f32
    %152 = vector.broadcast %cst_87 : f32 to vector<120x32xf32>
    %153 = arith.maximumf %151, %152 : vector<120x32xf32>
    %154 = arith.truncf %153 : vector<120x32xf32> to vector<120x32xbf16>
    %c0_88 = arith.constant 0 : index
    %c0_89 = arith.constant 0 : index
    %155 = vector.load %arg9[%c0_88, %c0_89] : memref<32x128xbf16, #tpu.memory_space<vmem>>, vector<32x128xbf16>
    %cst_90 = arith.constant dense<0.000000e+00> : vector<120x128xf32>
    %156 = tpu.matmul %154, %155, %cst_90 {dimension_numbers = #tpu.dot_dimension_numbers<[1], [0], [0], [1], [0, 0, 1, 1], [], []>} : vector<120x32xbf16>, vector<32x128xbf16>, vector<120x128xf32> -> vector<120x128xf32>
    %c0_91 = arith.constant 0 : index
    %c0_92 = arith.constant 0 : index
    %157 = vector.load %arg10[%c0_91, %c0_92] : memref<1x128xf32, #tpu.memory_space<vmem>>, vector<1x128xf32>
    %158 = vector.broadcast %157 : vector<1x128xf32> to vector<120x128xf32>
    %159 = arith.addf %156, %158 : vector<120x128xf32>
    %c0_93 = arith.constant 0 : index
    %c0_94 = arith.constant 0 : index
    %c0_95 = arith.constant 0 : index
    %160 = vector.load %arg11[%c0_93, %c0_94, %c0_95] : memref<1x120x128xf32, #tpu.memory_space<vmem>>, vector<1x120x128xf32>
    %161 = vector.shape_cast %160 : vector<1x120x128xf32> to vector<120x128xf32>
    %162 = vector.shape_cast %159 : vector<120x128xf32> to vector<1x120x128xf32>
    tpu.vector_store %arg11[%c0_93, %c0_94, %c0_95], %162 {strides = array<i32>} : memref<1x120x128xf32, #tpu.memory_space<vmem>>, vector<1x120x128xf32>,
    return
  }
  func.func @transform_0(%arg0: i32) -> (i32, i32, i32) {
    %c0_i32 = arith.constant 0 : i32
    %c0_i32_0 = arith.constant 0 : i32
    %c0_i32_1 = arith.constant 0 : i32
    return %arg0, %c0_i32, %c0_i32_0 : i32, i32, i32
  }
  func.func @transform_1(%arg0: i32) -> (i32, i32, i32) {
    %c0_i32 = arith.constant 0 : i32
    %c0_i32_0 = arith.constant 0 : i32
    %c0_i32_1 = arith.constant 0 : i32
    return %arg0, %c0_i32, %c0_i32_0 : i32, i32, i32
  }
  func.func @transform_2(%arg0: i32) -> (i32, i32) {
    %c0_i32 = arith.constant 0 : i32
    %c0_i32_0 = arith.constant 0 : i32
    %c0_i32_1 = arith.constant 0 : i32
    return %c0_i32, %c0_i32_0 : i32, i32
  }
  func.func @transform_3(%arg0: i32) -> (i32, i32) {
    %c0_i32 = arith.constant 0 : i32
    %c0_i32_0 = arith.constant 0 : i32
    %c0_i32_1 = arith.constant 0 : i32
    return %c0_i32, %c0_i32_0 : i32, i32
  }
  func.func @transform_4(%arg0: i32) -> (i32, i32) {
    %c0_i32 = arith.constant 0 : i32
    %c0_i32_0 = arith.constant 0 : i32
    %c0_i32_1 = arith.constant 0 : i32
    return %c0_i32, %c0_i32_0 : i32, i32
  }
  func.func @transform_5(%arg0: i32) -> (i32, i32) {
    %c0_i32 = arith.constant 0 : i32
    %c0_i32_0 = arith.constant 0 : i32
    %c0_i32_1 = arith.constant 0 : i32
    return %c0_i32, %c0_i32_0 : i32, i32
  }
  func.func @transform_6(%arg0: i32) -> (i32, i32) {
    %c0_i32 = arith.constant 0 : i32
    %c0_i32_0 = arith.constant 0 : i32
    %c0_i32_1 = arith.constant 0 : i32
    return %c0_i32, %c0_i32_0 : i32, i32
  }
  func.func @transform_7(%arg0: i32) -> (i32, i32) {
    %c0_i32 = arith.constant 0 : i32
    %c0_i32_0 = arith.constant 0 : i32
    %c0_i32_1 = arith.constant 0 : i32
    return %c0_i32, %c0_i32_0 : i32, i32
  }
  func.func @transform_8(%arg0: i32) -> (i32, i32) {
    %c0_i32 = arith.constant 0 : i32
    %c0_i32_0 = arith.constant 0 : i32
    %c0_i32_1 = arith.constant 0 : i32
    return %c0_i32, %c0_i32_0 : i32, i32
  }
  func.func @transform_9(%arg0: i32) -> (i32, i32) {
    %c0_i32 = arith.constant 0 : i32
    %c0_i32_0 = arith.constant 0 : i32
    %c0_i32_1 = arith.constant 0 : i32
    return %c0_i32, %c0_i32_0 : i32, i32
  }
  func.func @transform_10(%arg0: i32) -> (i32, i32, i32) {
    %c0_i32 = arith.constant 0 : i32
    %c0_i32_0 = arith.constant 0 : i32
    %c0_i32_1 = arith.constant 0 : i32
    return %arg0, %c0_i32, %c0_i32_0 : i32, i32, i32
  }
}

</mosaic_0001>

<llo_original>
// kernel: depthwise_xcorr_forward.1
$region0: #{depthwise_xcorr_forward.1}
  #allocation0 [shape = 'u32[]', space=smem, size = 0x4, offset = 0x4, fixed_abs, tag = 'smem constant byte address 0x4 - core index']
  #allocation1 [shape = 'u32[72,128]{1,0:T(1,128)}', space=vmem, size = 0x9000, scoped, tag = 'internal scratch']
  #allocation2 [shape = 'f32[32,32]{1,0:T(8,128)}', space=vmem, size = 0x4000, scoped, tag = 'scratch operand']
  #allocation3 [shape = 'f32[176,32]{1,0:T(8,128)}', space=vmem, size = 0x16000, scoped, tag = 'scratch operand']
  %s0 = inlined_call_operand.vmem [shape: bf16[2,32,36], index: 0, kind: input, shape index: {}]
  %s1 = inlined_call_operand.vmem [shape: bf16[2,176,36], index: 1, kind: input, shape index: {}]
  %s2 = inlined_call_operand.vmem [shape: bf16[36,32], index: 2, kind: input, shape index: {}]
  %s3 = inlined_call_operand.vmem [shape: f32[1,32], index: 3, kind: input, shape index: {}]
  %s4 = inlined_call_operand.vmem [shape: bf16[36,32], index: 4, kind: input, shape index: {}]
  %s5 = inlined_call_operand.vmem [shape: f32[1,32], index: 5, kind: input, shape index: {}]
  %s6 = inlined_call_operand.vmem [shape: bf16[32,32], index: 6, kind: input, shape index: {}]
  %s7 = inlined_call_operand.vmem [shape: f32[1,32], index: 7, kind: input, shape index: {}]
  %s8 = inlined_call_operand.vmem [shape: bf16[32,128], index: 8, kind: input, shape index: {}]
  %s9 = inlined_call_operand.vmem [shape: f32[1,128], index: 9, kind: input, shape index: {}]
  %s10 = inlined_call_operand.vmem [shape: f32[2,120,128], index: 10, kind: output, shape index: {}]
  %s11 = sld [smem:[#allocation0]]
  $region73: #{depthwise_xcorr_forward.1} parent=0
    _
  %s13 = ssub.s32 1, %s11
  %s14 = scalar_select 0, %s13, %s11
  loop: start=0, step=1, limit=4
  $region2: #{depthwise_xcorr_forward.1} parent=0 // loop_pre_header
    _
  $region3: #{depthwise_xcorr_forward.1} parent=0 // loop_header
    %s16 = sphi 0, %s20
    %p17 = scmp.ge.s32.totalorder %s16, 4
    %s26 = sphi 0, %s28
    %s29 = sphi 0, %s26
    %s30 = sphi 0, %s29
    %s46 = sphi 0, %s30
    %s52 = sphi 0, %s54
    %s55 = sphi 0, %s52
    %s56 = sphi 0, %s55
    %s72 = sphi 0, %s56
    %s76 = sphi 0, %s76
    %s78 = sphi 0, %s76
    %s79 = sphi 0, %s78
    %s93 = sphi 0, %s79
    %s97 = sphi 0, %s97
    %s99 = sphi 0, %s97
    %s100 = sphi 0, %s99
    %s114 = sphi 0, %s100
    %s118 = sphi 0, %s118
    %s120 = sphi 0, %s118
    %s121 = sphi 0, %s120
    %s135 = sphi 0, %s121
    %s139 = sphi 0, %s139
    %s141 = sphi 0, %s139
    %s142 = sphi 0, %s141
    %s156 = sphi 0, %s142
    %s160 = sphi 0, %s160
    %s162 = sphi 0, %s160
    %s163 = sphi 0, %s162
    %s177 = sphi 0, %s163
    %s181 = sphi 0, %s181
    %s183 = sphi 0, %s181
    %s184 = sphi 0, %s183
    %s198 = sphi 0, %s184
    %s202 = sphi 0, %s202
    %s204 = sphi 0, %s202
    %s205 = sphi 0, %s204
    %s219 = sphi 0, %s205
    %s223 = sphi 0, %s223
    %s225 = sphi 0, %s223
    %s226 = sphi 0, %s225
    %s240 = sphi 0, %s226
    %s246 = sphi 0, %s248
    %s249 = sphi 0, %s246
    %s250 = sphi 0, %s249
    %s266 = sphi 0, %s250
  $region4: #{depthwise_xcorr_forward.1} parent=0 // loop_header_branch
    %19 = sbr.rel (%p17) target = $region8
  $region5: #{depthwise_xcorr_forward.1} parent=0 // loop_body
    %s21 = ssub.s32 %s16, 1
    %s22 = ssub.s32 %s16, 2
    %s23 = sadd.s32 %s16, 1
    %s24 = ssub.s32 %s16, %s23
    %p25 = scmp.eq.s32.totalorder %s24, 0
    %s27 = sadd.s32 %s26, 1
    %s28 = scalar_select %p25, %s26, %s27
    %p31 = pneg %p25
    %p32 = scmp.eq.s32.totalorder %s16, 1
    %p33 = por %p31, %p32
    %p34 = scmp.ne.s32.totalorder %s26, %s29
    %p35 = scmp.eq.s32.totalorder %s16, 0
    %p36 = por %p34, %p35
    %p37 = scmp.ne.s32.totalorder %s26, %s29
    %p38 = scmp.eq.s32.totalorder %s21, 1
    %p39 = por %p37, %p38
    %p40 = scmp.ne.s32.totalorder %s29, %s30
    %p41 = scmp.eq.s32.totalorder %s21, 0
    %p42 = por %p40, %p41
    %p43 = scmp.ne.s32.totalorder %s29, %s30
    %p44 = scmp.eq.s32.totalorder %s22, 1
    %p45 = por %p43, %p44
    %p47 = scmp.ne.s32.totalorder %s30, %s46
    %p48 = scmp.eq.s32.totalorder %s22, 0
    %p49 = por %p47, %p48
    %s50 = ssub.s32 %s16, %s23
    %p51 = scmp.eq.s32.totalorder %s50, 0
    %s53 = sadd.s32 %s52, 1
    %s54 = scalar_select %p51, %s52, %s53
    %p57 = pneg %p51
    %p58 = scmp.eq.s32.totalorder %s16, 1
    %p59 = por %p57, %p58
    %p60 = scmp.ne.s32.totalorder %s52, %s55
    %p61 = scmp.eq.s32.totalorder %s16, 0
    %p62 = por %p60, %p61
    %p63 = scmp.ne.s32.totalorder %s52, %s55
    %p64 = scmp.eq.s32.totalorder %s21, 1
    %p65 = por %p63, %p64
    %p66 = scmp.ne.s32.totalorder %s55, %s56
    %p67 = scmp.eq.s32.totalorder %s21, 0
    %p68 = por %p66, %p67
    %p69 = scmp.ne.s32.totalorder %s55, %s56
    %p70 = scmp.eq.s32.totalorder %s22, 1
    %p71 = por %p69, %p70
    %p73 = scmp.ne.s32.totalorder %s56, %s72
    %p74 = scmp.eq.s32.totalorder %s22, 0
    %p75 = por %p73, %p74
    %s77 = sadd.s32 %s76, 1
    %p80 = scmp.eq.s32.totalorder %s16, 1
    %p81 = scmp.ne.s32.totalorder %s76, %s78
    %p82 = scmp.eq.s32.totalorder %s16, 0
    %p83 = por %p81, %p82
    %p84 = scmp.ne.s32.totalorder %s76, %s78
    %p85 = scmp.eq.s32.totalorder %s21, 1
    %p86 = por %p84, %p85
    %p87 = scmp.ne.s32.totalorder %s78, %s79
    %p88 = scmp.eq.s32.totalorder %s21, 0
    %p89 = por %p87, %p88
    %p90 = scmp.ne.s32.totalorder %s78, %s79
    %p91 = scmp.eq.s32.totalorder %s22, 1
    %p92 = por %p90, %p91
    %p94 = scmp.ne.s32.totalorder %s79, %s93
    %p95 = scmp.eq.s32.totalorder %s22, 0
    %p96 = por %p94, %p95
    %s98 = sadd.s32 %s97, 1
    %p101 = scmp.eq.s32.totalorder %s16, 1
    %p102 = scmp.ne.s32.totalorder %s97, %s99
    %p103 = scmp.eq.s32.totalorder %s16, 0
    %p104 = por %p102, %p103
    %p105 = scmp.ne.s32.totalorder %s97, %s99
    %p106 = scmp.eq.s32.totalorder %s21, 1
    %p107 = por %p105, %p106
    %p108 = scmp.ne.s32.totalorder %s99, %s100
    %p109 = scmp.eq.s32.totalorder %s21, 0
    %p110 = por %p108, %p109
    %p111 = scmp.ne.s32.totalorder %s99, %s100
    %p112 = scmp.eq.s32.totalorder %s22, 1
    %p113 = por %p111, %p112
    %p115 = scmp.ne.s32.totalorder %s100, %s114
    %p116 = scmp.eq.s32.totalorder %s22, 0
    %p117 = por %p115, %p116
    %s119 = sadd.s32 %s118, 1
    %p122 = scmp.eq.s32.totalorder %s16, 1
    %p123 = scmp.ne.s32.totalorder %s118, %s120
    %p124 = scmp.eq.s32.totalorder %s16, 0
    %p125 = por %p123, %p124
    %p126 = scmp.ne.s32.totalorder %s118, %s120
    %p127 = scmp.eq.s32.totalorder %s21, 1
    %p128 = por %p126, %p127
    %p129 = scmp.ne.s32.totalorder %s120, %s121
    %p130 = scmp.eq.s32.totalorder %s21, 0
    %p131 = por %p129, %p130
    %p132 = scmp.ne.s32.totalorder %s120, %s121
    %p133 = scmp.eq.s32.totalorder %s22, 1
    %p134 = por %p132, %p133
    %p136 = scmp.ne.s32.totalorder %s121, %s135
    %p137 = scmp.eq.s32.totalorder %s22, 0
    %p138 = por %p136, %p137
    %s140 = sadd.s32 %s139, 1
    %p143 = scmp.eq.s32.totalorder %s16, 1
    %p144 = scmp.ne.s32.totalorder %s139, %s141
    %p145 = scmp.eq.s32.totalorder %s16, 0
    %p146 = por %p144, %p145
    %p147 = scmp.ne.s32.totalorder %s139, %s141
    %p148 = scmp.eq.s32.totalorder %s21, 1
    %p149 = por %p147, %p148
    %p150 = scmp.ne.s32.totalorder %s141, %s142
    %p151 = scmp.eq.s32.totalorder %s21, 0
    %p152 = por %p150, %p151
    %p153 = scmp.ne.s32.totalorder %s141, %s142
    %p154 = scmp.eq.s32.totalorder %s22, 1
    %p155 = por %p153, %p154
    %p157 = scmp.ne.s32.totalorder %s142, %s156
    %p158 = scmp.eq.s32.totalorder %s22, 0
    %p159 = por %p157, %p158
    %s161 = sadd.s32 %s160, 1
    %p164 = scmp.eq.s32.totalorder %s16, 1
    %p165 = scmp.ne.s32.totalorder %s160, %s162
    %p166 = scmp.eq.s32.totalorder %s16, 0
    %p167 = por %p165, %p166
    %p168 = scmp.ne.s32.totalorder %s160, %s162
    %p169 = scmp.eq.s32.totalorder %s21, 1
    %p170 = por %p168, %p169
    %p171 = scmp.ne.s32.totalorder %s162, %s163
    %p172 = scmp.eq.s32.totalorder %s21, 0
    %p173 = por %p171, %p172
    %p174 = scmp.ne.s32.totalorder %s162, %s163
    %p175 = scmp.eq.s32.totalorder %s22, 1
    %p176 = por %p174, %p175
    %p178 = scmp.ne.s32.totalorder %s163, %s177
    %p179 = scmp.eq.s32.totalorder %s22, 0
    %p180 = por %p178, %p179
    %s182 = sadd.s32 %s181, 1
    %p185 = scmp.eq.s32.totalorder %s16, 1
    %p186 = scmp.ne.s32.totalorder %s181, %s183
    %p187 = scmp.eq.s32.totalorder %s16, 0
    %p188 = por %p186, %p187
    %p189 = scmp.ne.s32.totalorder %s181, %s183
    %p190 = scmp.eq.s32.totalorder %s21, 1
    %p191 = por %p189, %p190
    %p192 = scmp.ne.s32.totalorder %s183, %s184
    %p193 = scmp.eq.s32.totalorder %s21, 0
    %p194 = por %p192, %p193
    %p195 = scmp.ne.s32.totalorder %s183, %s184
    %p196 = scmp.eq.s32.totalorder %s22, 1
    %p197 = por %p195, %p196
    %p199 = scmp.ne.s32.totalorder %s184, %s198
    %p200 = scmp.eq.s32.totalorder %s22, 0
    %p201 = por %p199, %p200
    %s203 = sadd.s32 %s202, 1
    %p206 = scmp.eq.s32.totalorder %s16, 1
    %p207 = scmp.ne.s32.totalorder %s202, %s204
    %p208 = scmp.eq.s32.totalorder %s16, 0
    %p209 = por %p207, %p208
    %p210 = scmp.ne.s32.totalorder %s202, %s204
    %p211 = scmp.eq.s32.totalorder %s21, 1
    %p212 = por %p210, %p211
    %p213 = scmp.ne.s32.totalorder %s204, %s205
    %p214 = scmp.eq.s32.totalorder %s21, 0
    %p215 = por %p213, %p214
    %p216 = scmp.ne.s32.totalorder %s204, %s205
    %p217 = scmp.eq.s32.totalorder %s22, 1
    %p218 = por %p216, %p217
    %p220 = scmp.ne.s32.totalorder %s205, %s219
    %p221 = scmp.eq.s32.totalorder %s22, 0
    %p222 = por %p220, %p221
    %s224 = sadd.s32 %s223, 1
    %p227 = scmp.eq.s32.totalorder %s16, 1
    %p228 = scmp.ne.s32.totalorder %s223, %s225
    %p229 = scmp.eq.s32.totalorder %s16, 0
    %p230 = por %p228, %p229
    %p231 = scmp.ne.s32.totalorder %s223, %s225
    %p232 = scmp.eq.s32.totalorder %s21, 1
    %p233 = por %p231, %p232
    %p234 = scmp.ne.s32.totalorder %s225, %s226
    %p235 = scmp.eq.s32.totalorder %s21, 0
    %p236 = por %p234, %p235
    %p237 = scmp.ne.s32.totalorder %s225, %s226
    %p238 = scmp.eq.s32.totalorder %s22, 1
    %p239 = por %p237, %p238
    %p241 = scmp.ne.s32.totalorder %s226, %s240
    %p242 = scmp.eq.s32.totalorder %s22, 0
    %p243 = por %p241, %p242
    %s244 = ssub.s32 %s16, %s23
    %p245 = scmp.eq.s32.totalorder %s244, 0
    %s247 = sadd.s32 %s246, 1
    %s248 = scalar_select %p245, %s246, %s247
    %p251 = pneg %p245
    %p252 = scmp.eq.s32.totalorder %s16, 1
    %p253 = por %p251, %p252
    %p254 = scmp.ne.s32.totalorder %s246, %s249
    %p255 = scmp.eq.s32.totalorder %s16, 0
    %p256 = por %p254, %p255
    %p257 = scmp.ne.s32.totalorder %s246, %s249
    %p258 = scmp.eq.s32.totalorder %s21, 1
    %p259 = por %p257, %p258
    %p260 = scmp.ne.s32.totalorder %s249, %s250
    %p261 = scmp.eq.s32.totalorder %s21, 0
    %p262 = por %p260, %p261
    %p263 = scmp.ne.s32.totalorder %s249, %s250
    %p264 = scmp.eq.s32.totalorder %s22, 1
    %p265 = por %p263, %p264
    %p267 = scmp.ne.s32.totalorder %s250, %s266
    %p268 = scmp.eq.s32.totalorder %s22, 0
    %p269 = por %p267, %p268
    %p270 = scmp.le.s32.totalorder 1, %s16
    %p271 = scmp.lt.s32.totalorder %s16, 3
    %p272 = pnand %p270, %p271
    %p273 = pneg %p272
    // Predicated region
    $region9: #{depthwise_xcorr_forward.1} parent=5 // pred_check
      _
    $region10: #{depthwise_xcorr_forward.1} parent=5 // pred_check_branch
      %275 = sbr.rel (%p272) target = $region12
    $region11: #{depthwise_xcorr_forward.1} parent=5 // pred_region
      %s276 = ssub.s32 %s16, 1
      // Predicated region
      $region13: #{depthwise_xcorr_forward.1} parent=11 // pred_check
        %p277 = pneg %p89
      $region14: #{depthwise_xcorr_forward.1} parent=11 // pred_check_branch
        %279 = sbr.rel (%p277) target = $region16
      $region15: #{depthwise_xcorr_forward.1} parent=11 // pred_region
        _
      $region16: #{depthwise_xcorr_forward.1} parent=11 // pred_fallthru
        _
      // Predicated region
      $region17: #{depthwise_xcorr_forward.1} parent=11 // pred_check
        %p280 = pneg %p110
      $region18: #{depthwise_xcorr_forward.1} parent=11 // pred_check_branch
        %282 = sbr.rel (%p280) target = $region20
      $region19: #{depthwise_xcorr_forward.1} parent=11 // pred_region
        _
      $region20: #{depthwise_xcorr_forward.1} parent=11 // pred_fallthru
        _
      // Predicated region
      $region21: #{depthwise_xcorr_forward.1} parent=11 // pred_check
        %p283 = pneg %p131
      $region22: #{depthwise_xcorr_forward.1} parent=11 // pred_check_branch
        %285 = sbr.rel (%p283) target = $region24
      $region23: #{depthwise_xcorr_forward.1} parent=11 // pred_region
        _
      $region24: #{depthwise_xcorr_forward.1} parent=11 // pred_fallthru
        _
      // Predicated region
      $region25: #{depthwise_xcorr_forward.1} parent=11 // pred_check
        %p286 = pneg %p152
      $region26: #{depthwise_xcorr_forward.1} parent=11 // pred_check_branch
        %288 = sbr.rel (%p286) target = $region28
      $region27: #{depthwise_xcorr_forward.1} parent=11 // pred_region
        _
      $region28: #{depthwise_xcorr_forward.1} parent=11 // pred_fallthru
        _
      // Predicated region
      $region29: #{depthwise_xcorr_forward.1} parent=11 // pred_check
        %p289 = pneg %p173
      $region30: #{depthwise_xcorr_forward.1} parent=11 // pred_check_branch
        %291 = sbr.rel (%p289) target = $region32
      $region31: #{depthwise_xcorr_forward.1} parent=11 // pred_region
        _
      $region32: #{depthwise_xcorr_forward.1} parent=11 // pred_fallthru
        _
      // Predicated region
      $region33: #{depthwise_xcorr_forward.1} parent=11 // pred_check
        %p292 = pneg %p194
      $region34: #{depthwise_xcorr_forward.1} parent=11 // pred_check_branch
        %294 = sbr.rel (%p292) target = $region36
      $region35: #{depthwise_xcorr_forward.1} parent=11 // pred_region
        _
      $region36: #{depthwise_xcorr_forward.1} parent=11 // pred_fallthru
        _
      // Predicated region
      $region37: #{depthwise_xcorr_forward.1} parent=11 // pred_check
        %p295 = pneg %p215
      $region38: #{depthwise_xcorr_forward.1} parent=11 // pred_check_branch
        %297 = sbr.rel (%p295) target = $region40
      $region39: #{depthwise_xcorr_forward.1} parent=11 // pred_region
        _
      $region40: #{depthwise_xcorr_forward.1} parent=11 // pred_fallthru
        _
      // Predicated region
      $region41: #{depthwise_xcorr_forward.1} parent=11 // pred_check
        %p298 = pneg %p236
      $region42: #{depthwise_xcorr_forward.1} parent=11 // pred_check_branch
        %300 = sbr.rel (%p298) target = $region44
      $region43: #{depthwise_xcorr_forward.1} parent=11 // pred_region
        _
      $region44: #{depthwise_xcorr_forward.1} parent=11 // pred_fallthru
        _
    $region12: #{depthwise_xcorr_forward.1} parent=5 // pred_fallthru
      _
    %p301 = scmp.lt.s32.totalorder %s16, 2
    // Predicated region
    $region45: #{depthwise_xcorr_forward.1} parent=5 // pred_check
      %p302 = pneg %p301
    $region46: #{depthwise_xcorr_forward.1} parent=5 // pred_check_branch
      %304 = sbr.rel (%p302) target = $region48
    $region47: #{depthwise_xcorr_forward.1} parent=5 // pred_region
      // Predicated region
      $region49: #{depthwise_xcorr_forward.1} parent=47 // pred_check
        %p305 = pneg %p36
      $region50: #{depthwise_xcorr_forward.1} parent=47 // pred_check_branch
        %307 = sbr.rel (%p305) target = $region52
      $region51: #{depthwise_xcorr_forward.1} parent=47 // pred_region
        %p308 = scmp.lt.s32.totalorder %s16, 1
        %s309 = scalar_select %p308, %s16, 1
        %s310 = smul.addr %s309, 4
        %s311 = smul.addr %s310, 4
        %s312 = scalar_lea.vmem %s0, %s311
      $region52: #{depthwise_xcorr_forward.1} parent=47 // pred_fallthru
        _
      // Predicated region
      $region53: #{depthwise_xcorr_forward.1} parent=47 // pred_check
        %p313 = pneg %p62
      $region54: #{depthwise_xcorr_forward.1} parent=47 // pred_check_branch
        %315 = sbr.rel (%p313) target = $region56
      $region55: #{depthwise_xcorr_forward.1} parent=47 // pred_region
        %p316 = scmp.lt.s32.totalorder %s16, 1
        %s317 = scalar_select %p316, %s16, 1
        %s318 = smul.addr %s317, 22
        %s319 = smul.addr %s318, 4
        %s320 = scalar_lea.vmem %s1, %s319
      $region56: #{depthwise_xcorr_forward.1} parent=47 // pred_fallthru
        _
    $region48: #{depthwise_xcorr_forward.1} parent=5 // pred_fallthru
      _
    %p321 = scmp.le.s32.totalorder 1, %s16
    %p322 = scmp.lt.s32.totalorder %s16, 3
    %p323 = pnand %p321, %p322
    %p324 = pneg %p323
    // Predicated region
    $region57: #{depthwise_xcorr_forward.1} parent=5 // pred_check
      _
    $region58: #{depthwise_xcorr_forward.1} parent=5 // pred_check_branch
      %326 = sbr.rel (%p323) target = $region60
    $region59: #{depthwise_xcorr_forward.1} parent=5 // pred_region
      %s327 = ssub.s32 %s16, 1
      %p328 = scmp.lt.s32.totalorder %s21, 1
      %s329 = scalar_select %p328, %s21, 1
      %s330 = smul.addr %s329, 4
      %s331 = smul.addr %s330, 4
      %s332 = scalar_lea.vmem %s0, %s331
      %p333 = pneg %p42
      %p334 = pneg %p39
      %p335 = scmp.lt.s32.totalorder %s21, 1
      %s336 = scalar_select %p335, %s21, 1
      %s337 = smul.addr %s336, 22
      %s338 = smul.addr %s337, 4
      %s339 = scalar_lea.vmem %s1, %s338
      %p340 = pneg %p68
      %p341 = pneg %p65
      %p342 = pneg %p89
      %p343 = pneg %p86
      %p344 = pneg %p110
      %p345 = pneg %p107
      %p346 = pneg %p131
      %p347 = pneg %p128
      %p348 = pneg %p152
      %p349 = pneg %p149
      %p350 = pneg %p173
      %p351 = pneg %p170
      %p352 = pneg %p194
      %p353 = pneg %p191
      %p354 = pneg %p215
      %p355 = pneg %p212
      %p356 = pneg %p236
      %p357 = pneg %p233
      %p358 = pneg %p262
      %p359 = pneg %p259
      %p360 = scmp.lt.s32.totalorder %s21, 1
      %s361 = scalar_select %p360, %s21, 1
      %s362 = smul.addr %s361, 15
      %s363 = smul.addr %s362, 8
      %s364 = scalar_lea.vmem %s10, %s363
      %p365 = scmp.lt.s32.totalorder %s21, 1
      %s366 = scalar_select %p365, %s21, 1
      %s367 = smul.addr %s366, 4
      %s368 = smul.addr %s367, 4
      %s369 = scalar_lea.vmem %s0, %s368
      %p370 = scmp.lt.s32.totalorder %s21, 1
      %s371 = scalar_select %p370, %s21, 1
      %s372 = smul.addr %s371, 22
      %s373 = smul.addr %s372, 4
      %s374 = scalar_lea.vmem %s1, %s373
      %p375 = scmp.lt.s32.totalorder %s21, 1
      %s376 = scalar_select %p375, %s21, 1
      %s377 = smul.addr %s376, 15
      %s378 = smul.addr %s377, 8
      %s379 = scalar_lea.vmem %s10, %s378
      %v381 = vld [vmem:[%s369] sm:$0xf]
      %v382 = vld [vmem:[%s369 + $0x4] sm:$0xf]
      %v383 = vld [vmem:[%s369 + $0x8] sm:$0xf]
      %v384 = vld [vmem:[%s369 + $0xc] sm:$0xf]
      %v385 = vld [vmem:[%s2] sm:$0xf]
      %v386 = vld [vmem:[%s2 + $0x4] sm:$0xf]
      %v387 = vld [vmem:[%s2 + $0x8] sm:$0xf]
      %v388 = vld [vmem:[%s2 + $0xc] sm:$0xf]
      %v389 = vld [vmem:[%s2 + $0x10] sm:$0x3]
      %v390 = vld [vmem:[%s3] sm:$0x1]
      %v392 = vperm.slane %v390, 0
      %v398 = vunpack.c.l.b16 %v381
      %v399 = vunpack.c.l.b16 %v382
      %v400 = vunpack.c.l.b16 %v383
      %v401 = vunpack.c.l.b16 %v384
      %v402 = vpack.c.b16 %v399, %v398
      %v403 = vpack.c.b16 %v401, %v400
      %v409 = vunpack.c.l.b16 %v385
      %v410 = vunpack.c.l.b16 %v386
      %v411 = vunpack.c.l.b16 %v387
      %v412 = vunpack.c.l.b16 %v388
      %v413 = vunpack.c.l.b16 %v389
      %v414 = vpack.c.b16 %v410, %v409
      %v415 = vpack.c.b16 %v412, %v411
      %v416 = vpack.c.b16 %v413, %v413
      %vm419 = vcmask 293888
      %v421 = vsel %vm419, %v402, 0
      %v424 = vsel %vm419, %v403, 0
      %vm426 = vcmask 1041408
      %v428 = vsel %vm426, %v416, 0
      %430 = vmatpush.bf16.msra.mxu0 0
      %431 = vmatpush.bf16.msra.mxu0 0
      %432 = vmatpush.bf16.msra.mxu0 0
      %433 = vmatpush.bf16.msra.mxu0 0
      %434 = vmatpush.bf16.msra.mxu0 0
      %435 = vmatpush.bf16.msra.mxu0 %v428
      %436 = vmatpush.bf16.msra.mxu0 %v415
      %437 = vmatpush.bf16.msra.mxu0 %v414
      %438 = vmatmul.bf16.gmra.mxu0 %v421
      %v439 = vpop.f32.mrf.mxu0
      %v440 = vadd.f32 %v392, %v439
      %v441 = vpop.f32.mrf.mxu0
      %v442 = vadd.f32 %v392, %v441
      %443 = vmatmul.bf16.gmra.mxu0 %v424
      %v444 = vpop.f32.mrf.mxu0
      %v445 = vadd.f32 %v392, %v444
      %v446 = vpop.f32.mrf.mxu0
      %v447 = vadd.f32 %v392, %v446
      %448 = vdwg.mxu0
      %v449 = vmax.f32 %v440, 0.0
      %v450 = vmax.f32 %v442, 0.0
      %v451 = vmax.f32 %v445, 0.0
      %v452 = vmax.f32 %v447, 0.0
      %vm453 = vcmask 261120
      %454 = vst.msk [vmem:[#allocation2] sm:$0xff] %vm453, %v449
      %455 = vst.msk [vmem:[#allocation2 + $0x8] sm:$0xff] %vm453, %v450
      %456 = vst.msk [vmem:[#allocation2 + $0x10] sm:$0xff] %vm453, %v451
      %457 = vst.msk [vmem:[#allocation2 + $0x18] sm:$0xff] %vm453, %v452
      %v458 = vld [vmem:[%s374] sm:$0xf]
      %v459 = vld [vmem:[%s374 + $0x4] sm:$0xf]
      %v460 = vld [vmem:[%s374 + $0x8] sm:$0xf]
      %v461 = vld [vmem:[%s374 + $0xc] sm:$0xf]
      %v462 = vld [vmem:[%s374 + $0x10] sm:$0xf]
      %v463 = vld [vmem:[%s374 + $0x14] sm:$0xf]
      %v464 = vld [vmem:[%s374 + $0x18] sm:$0xf]
      %v465 = vld [vmem:[%s374 + $0x1c] sm:$0xf]
      %v466 = vld [vmem:[%s374 + $0x20] sm:$0xf]
      %v467 = vld [vmem:[%s374 + $0x24] sm:$0xf]
      %v468 = vld [vmem:[%s374 + $0x28] sm:$0xf]
      %v469 = vld [vmem:[%s374 + $0x2c] sm:$0xf]
      %v470 = vld [vmem:[%s374 + $0x30] sm:$0xf]
      %v471 = vld [vmem:[%s374 + $0x34] sm:$0xf]
      %v472 = vld [vmem:[%s374 + $0x38] sm:$0xf]
      %v473 = vld [vmem:[%s374 + $0x3c] sm:$0xf]
      %v474 = vld [vmem:[%s374 + $0x40] sm:$0xf]
      %v475 = vld [vmem:[%s374 + $0x44] sm:$0xf]
      %v476 = vld [vmem:[%s374 + $0x48] sm:$0xf]
      %v477 = vld [vmem:[%s374 + $0x4c] sm:$0xf]
      %v478 = vld [vmem:[%s374 + $0x50] sm:$0xf]
      %v479 = vld [vmem:[%s374 + $0x54] sm:$0xf]
      %v480 = vld [vmem:[%s4] sm:$0xf]
      %v481 = vld [vmem:[%s4 + $0x4] sm:$0xf]
      %v482 = vld [vmem:[%s4 + $0x8] sm:$0xf]
      %v483 = vld [vmem:[%s4 + $0xc] sm:$0xf]
      %v484 = vld [vmem:[%s4 + $0x10] sm:$0x3]
      %v485 = vld [vmem:[%s5] sm:$0x1]
      %v487 = vperm.slane %v485, 0
      %v511 = vunpack.c.l.b16 %v458
      %v512 = vunpack.c.l.b16 %v459
      %v513 = vunpack.c.l.b16 %v460
      %v514 = vunpack.c.l.b16 %v461
      %v515 = vunpack.c.l.b16 %v462
      %v516 = vunpack.c.l.b16 %v463
      %v517 = vunpack.c.l.b16 %v464
      %v518 = vunpack.c.l.b16 %v465
      %v519 = vunpack.c.l.b16 %v466
      %v520 = vunpack.c.l.b16 %v467
      %v521 = vunpack.c.l.b16 %v468
      %v522 = vunpack.c.l.b16 %v469
      %v523 = vunpack.c.l.b16 %v470
      %v524 = vunpack.c.l.b16 %v471
      %v525 = vunpack.c.l.b16 %v472
      %v526 = vunpack.c.l.b16 %v473
      %v527 = vunpack.c.l.b16 %v474
      %v528 = vunpack.c.l.b16 %v475
      %v529 = vunpack.c.l.b16 %v476
      %v530 = vunpack.c.l.b16 %v477
      %v531 = vunpack.c.l.b16 %v478
      %v532 = vunpack.c.l.b16 %v479
      %v533 = vpack.c.b16 %v512, %v511
      %v534 = vpack.c.b16 %v514, %v513
      %v535 = vpack.c.b16 %v516, %v515
      %v536 = vpack.c.b16 %v518, %v517
      %v537 = vpack.c.b16 %v520, %v519
      %v538 = vpack.c.b16 %v522, %v521
      %v539 = vpack.c.b16 %v524, %v523
      %v540 = vpack.c.b16 %v526, %v525
      %v541 = vpack.c.b16 %v528, %v527
      %v542 = vpack.c.b16 %v530, %v529
      %v543 = vpack.c.b16 %v532, %v531
      %v549 = vunpack.c.l.b16 %v480
      %v550 = vunpack.c.l.b16 %v481
      %v551 = vunpack.c.l.b16 %v482
      %v552 = vunpack.c.l.b16 %v483
      %v553 = vunpack.c.l.b16 %v484
      %v554 = vpack.c.b16 %v550, %v549
      %v555 = vpack.c.b16 %v552, %v551
      %v556 = vpack.c.b16 %v553, %v553
      %v560 = vsel %vm419, %v533, 0
      %v563 = vsel %vm419, %v534, 0
      %v566 = vsel %vm419, %v535, 0
      %v569 = vsel %vm419, %v536, 0
      %v572 = vsel %vm419, %v537, 0
      %v575 = vsel %vm419, %v538, 0
      %v578 = vsel %vm419, %v539, 0
      %v581 = vsel %vm419, %v540, 0
      %v584 = vsel %vm419, %v541, 0
      %v587 = vsel %vm419, %v542, 0
      %v590 = vsel %vm419, %v543, 0
      %v593 = vsel %vm426, %v556, 0
      %595 = vmatpush.bf16.msra.mxu0 0
      %596 = vmatpush.bf16.msra.mxu0 0
      %597 = vmatpush.bf16.msra.mxu0 0
      %598 = vmatpush.bf16.msra.mxu0 0
      %599 = vmatpush.bf16.msra.mxu0 0
      %600 = vmatpush.bf16.msra.mxu0 %v593
      %601 = vmatpush.bf16.msra.mxu0 %v555
      %602 = vmatpush.bf16.msra.mxu0 %v554
      %603 = vmatmul.bf16.gmra.mxu0 %v560
      %v604 = vpop.f32.mrf.mxu0
      %v605 = vadd.f32 %v487, %v604
      %v606 = vpop.f32.mrf.mxu0
      %v607 = vadd.f32 %v487, %v606
      %608 = vmatmul.bf16.gmra.mxu0 %v563
      %v609 = vpop.f32.mrf.mxu0
      %v610 = vadd.f32 %v487, %v609
      %v611 = vpop.f32.mrf.mxu0
      %v612 = vadd.f32 %v487, %v611
      %613 = vmatmul.bf16.gmra.mxu0 %v566
      %v614 = vpop.f32.mrf.mxu0
      %v615 = vadd.f32 %v487, %v614
      %v616 = vpop.f32.mrf.mxu0
      %v617 = vadd.f32 %v487, %v616
      %618 = vmatmul.bf16.gmra.mxu0 %v569
      %v619 = vpop.f32.mrf.mxu0
      %v620 = vadd.f32 %v487, %v619
      %v621 = vpop.f32.mrf.mxu0
      %v622 = vadd.f32 %v487, %v621
      %623 = vmatmul.bf16.gmra.mxu0 %v572
      %v624 = vpop.f32.mrf.mxu0
      %v625 = vadd.f32 %v487, %v624
      %v626 = vpop.f32.mrf.mxu0
      %v627 = vadd.f32 %v487, %v626
      %628 = vmatmul.bf16.gmra.mxu0 %v575
      %v629 = vpop.f32.mrf.mxu0
      %v630 = vadd.f32 %v487, %v629
      %v631 = vpop.f32.mrf.mxu0
      %v632 = vadd.f32 %v487, %v631
      %633 = vmatmul.bf16.gmra.mxu0 %v578
      %v634 = vpop.f32.mrf.mxu0
      %v635 = vadd.f32 %v487, %v634
      %v636 = vpop.f32.mrf.mxu0
      %v637 = vadd.f32 %v487, %v636
      %638 = vmatmul.bf16.gmra.mxu0 %v581
      %v639 = vpop.f32.mrf.mxu0
      %v640 = vadd.f32 %v487, %v639
      %v641 = vpop.f32.mrf.mxu0
      %v642 = vadd.f32 %v487, %v641
      %643 = vmatmul.bf16.gmra.mxu0 %v584
      %v644 = vpop.f32.mrf.mxu0
      %v645 = vadd.f32 %v487, %v644
      %v646 = vpop.f32.mrf.mxu0
      %v647 = vadd.f32 %v487, %v646
      %648 = vmatmul.bf16.gmra.mxu0 %v587
      %v649 = vpop.f32.mrf.mxu0
      %v650 = vadd.f32 %v487, %v649
      %v651 = vpop.f32.mrf.mxu0
      %v652 = vadd.f32 %v487, %v651
      %653 = vmatmul.bf16.gmra.mxu0 %v590
      %v654 = vpop.f32.mrf.mxu0
      %v655 = vadd.f32 %v487, %v654
      %v656 = vpop.f32.mrf.mxu0
      %v657 = vadd.f32 %v487, %v656
      %658 = vdwg.mxu0
      %v659 = vmax.f32 %v605, 0.0
      %v660 = vmax.f32 %v607, 0.0
      %v661 = vmax.f32 %v610, 0.0
      %v662 = vmax.f32 %v612, 0.0
      %v663 = vmax.f32 %v615, 0.0
      %v664 = vmax.f32 %v617, 0.0
      %v665 = vmax.f32 %v620, 0.0
      %v666 = vmax.f32 %v622, 0.0
      %v667 = vmax.f32 %v625, 0.0
      %v668 = vmax.f32 %v627, 0.0
      %v669 = vmax.f32 %v630, 0.0
      %v670 = vmax.f32 %v632, 0.0
      %v671 = vmax.f32 %v635, 0.0
      %v672 = vmax.f32 %v637, 0.0
      %v673 = vmax.f32 %v640, 0.0
      %v674 = vmax.f32 %v642, 0.0
      %v675 = vmax.f32 %v645, 0.0
      %v676 = vmax.f32 %v647, 0.0
      %v677 = vmax.f32 %v650, 0.0
      %v678 = vmax.f32 %v652, 0.0
      %v679 = vmax.f32 %v655, 0.0
      %v680 = vmax.f32 %v657, 0.0
      %681 = vst.msk [vmem:[#allocation3] sm:$0xff] %vm453, %v659
      %682 = vst.msk [vmem:[#allocation3 + $0x8] sm:$0xff] %vm453, %v660
      %683 = vst.msk [vmem:[#allocation3 + $0x10] sm:$0xff] %vm453, %v661
      %684 = vst.msk [vmem:[#allocation3 + $0x18] sm:$0xff] %vm453, %v662
      %685 = vst.msk [vmem:[#allocation3 + $0x20] sm:$0xff] %vm453, %v663
      %686 = vst.msk [vmem:[#allocation3 + $0x28] sm:$0xff] %vm453, %v664
      %687 = vst.msk [vmem:[#allocation3 + $0x30] sm:$0xff] %vm453, %v665
      %688 = vst.msk [vmem:[#allocation3 + $0x38] sm:$0xff] %vm453, %v666
      %689 = vst.msk [vmem:[#allocation3 + $0x40] sm:$0xff] %vm453, %v667
      %690 = vst.msk [vmem:[#allocation3 + $0x48] sm:$0xff] %vm453, %v668
      %691 = vst.msk [vmem:[#allocation3 + $0x50] sm:$0xff] %vm453, %v669
      %692 = vst.msk [vmem:[#allocation3 + $0x58] sm:$0xff] %vm453, %v670
      %693 = vst.msk [vmem:[#allocation3 + $0x60] sm:$0xff] %vm453, %v671
      %694 = vst.msk [vmem:[#allocation3 + $0x68] sm:$0xff] %vm453, %v672
      %695 = vst.msk [vmem:[#allocation3 + $0x70] sm:$0xff] %vm453, %v673
      %696 = vst.msk [vmem:[#allocation3 + $0x78] sm:$0xff] %vm453, %v674
      %697 = vst.msk [vmem:[#allocation3 + $0x80] sm:$0xff] %vm453, %v675
      %698 = vst.msk [vmem:[#allocation3 + $0x88] sm:$0xff] %vm453, %v676
      %699 = vst.msk [vmem:[#allocation3 + $0x90] sm:$0xff] %vm453, %v677
      %700 = vst.msk [vmem:[#allocation3 + $0x98] sm:$0xff] %vm453, %v678
      %701 = vst.msk [vmem:[#allocation3 + $0xa0] sm:$0xff] %vm453, %v679
      %702 = vst.msk [vmem:[#allocation3 + $0xa8] sm:$0xff] %vm453, %v680
      %v703 = vld [vmem:[#allocation3] sm:$0xff]
      %v704 = vld [vmem:[#allocation3 + $0x8] sm:$0xff]
      %v705 = vld [vmem:[#allocation3 + $0x10] sm:$0xff]
      %v706 = vld [vmem:[#allocation3 + $0x18] sm:$0xff]
      %v707 = vld [vmem:[#allocation3 + $0x20] sm:$0xff]
      %v708 = vld [vmem:[#allocation3 + $0x28] sm:$0xff]
      %v709 = vld [vmem:[#allocation3 + $0x30] sm:$0xff]
      %v710 = vld [vmem:[#allocation3 + $0x38] sm:$0xff]
      %v711 = vld [vmem:[#allocation3 + $0x40] sm:$0xff]
      %v712 = vld [vmem:[#allocation3 + $0x48] sm:$0xff]
      %v713 = vld [vmem:[#allocation3 + $0x50] sm:$0xff]
      %v714 = vld [vmem:[#allocation3 + $0x58] sm:$0xff]
      %v715 = vld [vmem:[#allocation3 + $0x60] sm:$0xff]
      %v716 = vld [vmem:[#allocation3 + $0x68] sm:$0xff]
      %v717 = vld [vmem:[#allocation3 + $0x70] sm:$0xff]
      %v718 = vld [vmem:[#allocation2] sm:$0x1]
      %v719 = vperm.slane %v718, 0
      %v720 = vmul.f32 %v703, %v719
      %v721 = vmul.f32 %v704, %v719
      %v722 = vmul.f32 %v705, %v719
      %v723 = vmul.f32 %v706, %v719
      %v724 = vmul.f32 %v707, %v719
      %v725 = vmul.f32 %v708, %v719
      %v726 = vmul.f32 %v709, %v719
      %v727 = vmul.f32 %v710, %v719
      %v728 = vmul.f32 %v711, %v719
      %v729 = vmul.f32 %v712, %v719
      %v730 = vmul.f32 %v713, %v719
      %v731 = vmul.f32 %v714, %v719
      %v732 = vmul.f32 %v715, %v719
      %v733 = vmul.f32 %v716, %v719
      %v734 = vmul.f32 %v717, %v719
      %v735 = vadd.f32 %v720, 0.0
      %v736 = vadd.f32 %v721, 0.0
      %v737 = vadd.f32 %v722, 0.0
      %v738 = vadd.f32 %v723, 0.0
      %v739 = vadd.f32 %v724, 0.0
      %v740 = vadd.f32 %v725, 0.0
      %v741 = vadd.f32 %v726, 0.0
      %v742 = vadd.f32 %v727, 0.0
      %v743 = vadd.f32 %v728, 0.0
      %v744 = vadd.f32 %v729, 0.0
      %v745 = vadd.f32 %v730, 0.0
      %v746 = vadd.f32 %v731, 0.0
      %v747 = vadd.f32 %v732, 0.0
      %v748 = vadd.f32 %v733, 0.0
      %v749 = vadd.f32 %v734, 0.0
      %v750 = vld [vmem:[#allocation3 + $0x1] sm:$0xff]
      %v751 = vld [vmem:[#allocation3 + $0x9] sm:$0xff]
      %v752 = vld [vmem:[#allocation3 + $0x11] sm:$0xff]
      %v753 = vld [vmem:[#allocation3 + $0x19] sm:$0xff]
      %v754 = vld [vmem:[#allocation3 + $0x21] sm:$0xff]
      %v755 = vld [vmem:[#allocation3 + $0x29] sm:$0xff]
      %v756 = vld [vmem:[#allocation3 + $0x31] sm:$0xff]
      %v757 = vld [vmem:[#allocation3 + $0x39] sm:$0xff]
      %v758 = vld [vmem:[#allocation3 + $0x41] sm:$0xff]
      %v759 = vld [vmem:[#allocation3 + $0x49] sm:$0xff]
      %v760 = vld [vmem:[#allocation3 + $0x51] sm:$0xff]
      %v761 = vld [vmem:[#allocation3 + $0x59] sm:$0xff]
      %v762 = vld [vmem:[#allocation3 + $0x61] sm:$0xff]
      %v763 = vld [vmem:[#allocation3 + $0x69] sm:$0xff]
      %v764 = vld [vmem:[#allocation3 + $0x71] sm:$0xff]
      %v765 = vld [vmem:[#allocation2 + $0x1] sm:$0x1]
      %v766 = vperm.slane %v765, 0
      %v767 = vmul.f32 %v750, %v766
      %v768 = vmul.f32 %v751, %v766
      %v769 = vmul.f32 %v752, %v766
      %v770 = vmul.f32 %v753, %v766
      %v771 = vmul.f32 %v754, %v766
      %v772 = vmul.f32 %v755, %v766
      %v773 = vmul.f32 %v756, %v766
      %v774 = vmul.f32 %v757, %v766
      %v775 = vmul.f32 %v758, %v766
      %v776 = vmul.f32 %v759, %v766
      %v777 = vmul.f32 %v760, %v766
      %v778 = vmul.f32 %v761, %v766
      %v779 = vmul.f32 %v762, %v766
      %v780 = vmul.f32 %v763, %v766
      %v781 = vmul.f32 %v764, %v766
      %v782 = vadd.f32 %v735, %v767
      %v783 = vadd.f32 %v736, %v768
      %v784 = vadd.f32 %v737, %v769
      %v785 = vadd.f32 %v738, %v770
      %v786 = vadd.f32 %v739, %v771
      %v787 = vadd.f32 %v740, %v772
      %v788 = vadd.f32 %v741, %v773
      %v789 = vadd.f32 %v742, %v774
      %v790 = vadd.f32 %v743, %v775
      %v791 = vadd.f32 %v744, %v776
      %v792 = vadd.f32 %v745, %v777
      %v793 = vadd.f32 %v746, %v778
      %v794 = vadd.f32 %v747, %v779
      %v795 = vadd.f32 %v748, %v780
      %v796 = vadd.f32 %v749, %v781
      %v797 = vld [vmem:[#allocation3 + $0x2] sm:$0xff]
      %v798 = vld [vmem:[#allocation3 + $0xa] sm:$0xff]
      %v799 = vld [vmem:[#allocation3 + $0x12] sm:$0xff]
      %v800 = vld [vmem:[#allocation3 + $0x1a] sm:$0xff]
      %v801 = vld [vmem:[#allocation3 + $0x22] sm:$0xff]
      %v802 = vld [vmem:[#allocation3 + $0x2a] sm:$0xff]
      %v803 = vld [vmem:[#allocation3 + $0x32] sm:$0xff]
      %v804 = vld [vmem:[#allocation3 + $0x3a] sm:$0xff]
      %v805 = vld [vmem:[#allocation3 + $0x42] sm:$0xff]
      %v806 = vld [vmem:[#allocation3 + $0x4a] sm:$0xff]
      %v807 = vld [vmem:[#allocation3 + $0x52] sm:$0xff]
      %v808 = vld [vmem:[#allocation3 + $0x5a] sm:$0xff]
      %v809 = vld [vmem:[#allocation3 + $0x62] sm:$0xff]
      %v810 = vld [vmem:[#allocation3 + $0x6a] sm:$0xff]
      %v811 = vld [vmem:[#allocation3 + $0x72] sm:$0xff]
      %v812 = vld [vmem:[#allocation2 + $0x2] sm:$0x1]
      %v813 = vperm.slane %v812, 0
      %v814 = vmul.f32 %v797, %v813
      %v815 = vmul.f32 %v798, %v813
      %v816 = vmul.f32 %v799, %v813
      %v817 = vmul.f32 %v800, %v813
      %v818 = vmul.f32 %v801, %v813
      %v819 = vmul.f32 %v802, %v813
      %v820 = vmul.f32 %v803, %v813
      %v821 = vmul.f32 %v804, %v813
      %v822 = vmul.f32 %v805, %v813
      %v823 = vmul.f32 %v806, %v813
      %v824 = vmul.f32 %v807, %v813
      %v825 = vmul.f32 %v808, %v813
      %v826 = vmul.f32 %v809, %v813
      %v827 = vmul.f32 %v810, %v813
      %v828 = vmul.f32 %v811, %v813
      %v829 = vadd.f32 %v782, %v814
      %v830 = vadd.f32 %v783, %v815
      %v831 = vadd.f32 %v784, %v816
      %v832 = vadd.f32 %v785, %v817
      %v833 = vadd.f32 %v786, %v818
      %v834 = vadd.f32 %v787, %v819
      %v835 = vadd.f32 %v788, %v820
      %v836 = vadd.f32 %v789, %v821
      %v837 = vadd.f32 %v790, %v822
      %v838 = vadd.f32 %v791, %v823
      %v839 = vadd.f32 %v792, %v824
      %v840 = vadd.f32 %v793, %v825
      %v841 = vadd.f32 %v794, %v826
      %v842 = vadd.f32 %v795, %v827
      %v843 = vadd.f32 %v796, %v828
      %v844 = vld [vmem:[#allocation3 + $0x3] sm:$0xff]
      %v845 = vld [vmem:[#allocation3 + $0xb] sm:$0xff]
      %v846 = vld [vmem:[#allocation3 + $0x13] sm:$0xff]
      %v847 = vld [vmem:[#allocation3 + $0x1b] sm:$0xff]
      %v848 = vld [vmem:[#allocation3 + $0x23] sm:$0xff]
      %v849 = vld [vmem:[#allocation3 + $0x2b] sm:$0xff]
      %v850 = vld [vmem:[#allocation3 + $0x33] sm:$0xff]
      %v851 = vld [vmem:[#allocation3 + $0x3b] sm:$0xff]
      %v852 = vld [vmem:[#allocation3 + $0x43] sm:$0xff]
      %v853 = vld [vmem:[#allocation3 + $0x4b] sm:$0xff]
      %v854 = vld [vmem:[#allocation3 + $0x53] sm:$0xff]
      %v855 = vld [vmem:[#allocation3 + $0x5b] sm:$0xff]
      %v856 = vld [vmem:[#allocation3 + $0x63] sm:$0xff]
      %v857 = vld [vmem:[#allocation3 + $0x6b] sm:$0xff]
      %v858 = vld [vmem:[#allocation3 + $0x73] sm:$0xff]
      %v859 = vld [vmem:[#allocation2 + $0x3] sm:$0x1]
      %v860 = vperm.slane %v859, 0
      %v861 = vmul.f32 %v844, %v860
      %v862 = vmul.f32 %v845, %v860
      %v863 = vmul.f32 %v846, %v860
      %v864 = vmul.f32 %v847, %v860
      %v865 = vmul.f32 %v848, %v860
      %v866 = vmul.f32 %v849, %v860
      %v867 = vmul.f32 %v850, %v860
      %v868 = vmul.f32 %v851, %v860
      %v869 = vmul.f32 %v852, %v860
      %v870 = vmul.f32 %v853, %v860
      %v871 = vmul.f32 %v854, %v860
      %v872 = vmul.f32 %v855, %v860
      %v873 = vmul.f32 %v856, %v860
      %v874 = vmul.f32 %v857, %v860
      %v875 = vmul.f32 %v858, %v860
      %v876 = vadd.f32 %v829, %v861
      %v877 = vadd.f32 %v830, %v862
      %v878 = vadd.f32 %v831, %v863
      %v879 = vadd.f32 %v832, %v864
      %v880 = vadd.f32 %v833, %v865
      %v881 = vadd.f32 %v834, %v866
      %v882 = vadd.f32 %v835, %v867
      %v883 = vadd.f32 %v836, %v868
      %v884 = vadd.f32 %v837, %v869
      %v885 = vadd.f32 %v838, %v870
      %v886 = vadd.f32 %v839, %v871
      %v887 = vadd.f32 %v840, %v872
      %v888 = vadd.f32 %v841, %v873
      %v889 = vadd.f32 %v842, %v874
      %v890 = vadd.f32 %v843, %v875
      %v891 = vld [vmem:[#allocation3 + $0x4] sm:$0xff]
      %v892 = vld [vmem:[#allocation3 + $0xc] sm:$0xff]
      %v893 = vld [vmem:[#allocation3 + $0x14] sm:$0xff]
      %v894 = vld [vmem:[#allocation3 + $0x1c] sm:$0xff]
      %v895 = vld [vmem:[#allocation3 + $0x24] sm:$0xff]
      %v896 = vld [vmem:[#allocation3 + $0x2c] sm:$0xff]
      %v897 = vld [vmem:[#allocation3 + $0x34] sm:$0xff]
      %v898 = vld [vmem:[#allocation3 + $0x3c] sm:$0xff]
      %v899 = vld [vmem:[#allocation3 + $0x44] sm:$0xff]
      %v900 = vld [vmem:[#allocation3 + $0x4c] sm:$0xff]
      %v901 = vld [vmem:[#allocation3 + $0x54] sm:$0xff]
      %v902 = vld [vmem:[#allocation3 + $0x5c] sm:$0xff]
      %v903 = vld [vmem:[#allocation3 + $0x64] sm:$0xff]
      %v904 = vld [vmem:[#allocation3 + $0x6c] sm:$0xff]
      %v905 = vld [vmem:[#allocation3 + $0x74] sm:$0xff]
      %v906 = vld [vmem:[#allocation2 + $0x4] sm:$0x1]
      %v907 = vperm.slane %v906, 0
      %v908 = vmul.f32 %v891, %v907
      %v909 = vmul.f32 %v892, %v907
      %v910 = vmul.f32 %v893, %v907
      %v911 = vmul.f32 %v894, %v907
      %v912 = vmul.f32 %v895, %v907
      %v913 = vmul.f32 %v896, %v907
      %v914 = vmul.f32 %v897, %v907
      %v915 = vmul.f32 %v898, %v907
      %v916 = vmul.f32 %v899, %v907
      %v917 = vmul.f32 %v900, %v907
      %v918 = vmul.f32 %v901, %v907
      %v919 = vmul.f32 %v902, %v907
      %v920 = vmul.f32 %v903, %v907
      %v921 = vmul.f32 %v904, %v907
      %v922 = vmul.f32 %v905, %v907
      %v923 = vadd.f32 %v876, %v908
      %v924 = vadd.f32 %v877, %v909
      %v925 = vadd.f32 %v878, %v910
      %v926 = vadd.f32 %v879, %v911
      %v927 = vadd.f32 %v880, %v912
      %v928 = vadd.f32 %v881, %v913
      %v929 = vadd.f32 %v882, %v914
      %v930 = vadd.f32 %v883, %v915
      %v931 = vadd.f32 %v884, %v916
      %v932 = vadd.f32 %v885, %v917
      %v933 = vadd.f32 %v886, %v918
      %v934 = vadd.f32 %v887, %v919
      %v935 = vadd.f32 %v888, %v920
      %v936 = vadd.f32 %v889, %v921
      %v937 = vadd.f32 %v890, %v922
      %v938 = vld [vmem:[#allocation3 + $0xd] sm:$0xff]
      %v939 = vld [vmem:[#allocation3 + $0x15] sm:$0xff]
      %v940 = vld [vmem:[#allocation3 + $0x1d] sm:$0xff]
      %v941 = vld [vmem:[#allocation3 + $0x25] sm:$0xff]
      %v942 = vld [vmem:[#allocation3 + $0x2d] sm:$0xff]
      %v943 = vld [vmem:[#allocation3 + $0x35] sm:$0xff]
      %v944 = vld [vmem:[#allocation3 + $0x3d] sm:$0xff]
      %v945 = vld [vmem:[#allocation3 + $0x45] sm:$0xff]
      %v946 = vld [vmem:[#allocation3 + $0x4d] sm:$0xff]
      %v947 = vld [vmem:[#allocation3 + $0x55] sm:$0xff]
      %v948 = vld [vmem:[#allocation3 + $0x5d] sm:$0xff]
      %v949 = vld [vmem:[#allocation3 + $0x65] sm:$0xff]
      %v950 = vld [vmem:[#allocation3 + $0x6d] sm:$0xff]
      %v951 = vld [vmem:[#allocation3 + $0x75] sm:$0xff]
      %v952 = vld [vmem:[#allocation3 + $0x7d] sm:$0xff]
      %v953 = vld [vmem:[#allocation2 + $0x5] sm:$0x1]
      %v954 = vperm.slane %v953, 0
      %v955 = vmul.f32 %v938, %v954
      %v956 = vmul.f32 %v939, %v954
      %v957 = vmul.f32 %v940, %v954
      %v958 = vmul.f32 %v941, %v954
      %v959 = vmul.f32 %v942, %v954
      %v960 = vmul.f32 %v943, %v954
      %v961 = vmul.f32 %v944, %v954
      %v962 = vmul.f32 %v945, %v954
      %v963 = vmul.f32 %v946, %v954
      %v964 = vmul.f32 %v947, %v954
      %v965 = vmul.f32 %v948, %v954
      %v966 = vmul.f32 %v949, %v954
      %v967 = vmul.f32 %v950, %v954
      %v968 = vmul.f32 %v951, %v954
      %v969 = vmul.f32 %v952, %v954
      %v970 = vadd.f32 %v923, %v955
      %v971 = vadd.f32 %v924, %v956
      %v972 = vadd.f32 %v925, %v957
      %v973 = vadd.f32 %v926, %v958
      %v974 = vadd.f32 %v927, %v959
      %v975 = vadd.f32 %v928, %v960
      %v976 = vadd.f32 %v929, %v961
      %v977 = vadd.f32 %v930, %v962
      %v978 = vadd.f32 %v931, %v963
      %v979 = vadd.f32 %v932, %v964
      %v980 = vadd.f32 %v933, %v965
      %v981 = vadd.f32 %v934, %v966
      %v982 = vadd.f32 %v935, %v967
      %v983 = vadd.f32 %v936, %v968
      %v984 = vadd.f32 %v937, %v969
      %v985 = vld [vmem:[#allocation3 + $0xe] sm:$0xff]
      %v986 = vld [vmem:[#allocation3 + $0x16] sm:$0xff]
      %v987 = vld [vmem:[#allocation3 + $0x1e] sm:$0xff]
      %v988 = vld [vmem:[#allocation3 + $0x26] sm:$0xff]
      %v989 = vld [vmem:[#allocation3 + $0x2e] sm:$0xff]
      %v990 = vld [vmem:[#allocation3 + $0x36] sm:$0xff]
      %v991 = vld [vmem:[#allocation3 + $0x3e] sm:$0xff]
      %v992 = vld [vmem:[#allocation3 + $0x46] sm:$0xff]
      %v993 = vld [vmem:[#allocation3 + $0x4e] sm:$0xff]
      %v994 = vld [vmem:[#allocation3 + $0x56] sm:$0xff]
      %v995 = vld [vmem:[#allocation3 + $0x5e] sm:$0xff]
      %v996 = vld [vmem:[#allocation3 + $0x66] sm:$0xff]
      %v997 = vld [vmem:[#allocation3 + $0x6e] sm:$0xff]
      %v998 = vld [vmem:[#allocation3 + $0x76] sm:$0xff]
      %v999 = vld [vmem:[#allocation3 + $0x7e] sm:$0xff]
      %v1000 = vld [vmem:[#allocation2 + $0x6] sm:$0x1]
      %v1001 = vperm.slane %v1000, 0
      %v1002 = vmul.f32 %v985, %v1001
      %v1003 = vmul.f32 %v986, %v1001
      %v1004 = vmul.f32 %v987, %v1001
      %v1005 = vmul.f32 %v988, %v1001
      %v1006 = vmul.f32 %v989, %v1001
      %v1007 = vmul.f32 %v990, %v1001
      %v1008 = vmul.f32 %v991, %v1001
      %v1009 = vmul.f32 %v992, %v1001
      %v1010 = vmul.f32 %v993, %v1001
      %v1011 = vmul.f32 %v994, %v1001
      %v1012 = vmul.f32 %v995, %v1001
      %v1013 = vmul.f32 %v996, %v1001
      %v1014 = vmul.f32 %v997, %v1001
      %v1015 = vmul.f32 %v998, %v1001
      %v1016 = vmul.f32 %v999, %v1001
      %v1017 = vadd.f32 %v970, %v1002
      %v1018 = vadd.f32 %v971, %v1003
      %v1019 = vadd.f32 %v972, %v1004
      %v1020 = vadd.f32 %v973, %v1005
      %v1021 = vadd.f32 %v974, %v1006
      %v1022 = vadd.f32 %v975, %v1007
      %v1023 = vadd.f32 %v976, %v1008
      %v1024 = vadd.f32 %v977, %v1009
      %v1025 = vadd.f32 %v978, %v1010
      %v1026 = vadd.f32 %v979, %v1011
      %v1027 = vadd.f32 %v980, %v1012
      %v1028 = vadd.f32 %v981, %v1013
      %v1029 = vadd.f32 %v982, %v1014
      %v1030 = vadd.f32 %v983, %v1015
      %v1031 = vadd.f32 %v984, %v1016
      %v1032 = vld [vmem:[#allocation3 + $0xf] sm:$0xff]
      %v1033 = vld [vmem:[#allocation3 + $0x17] sm:$0xff]
      %v1034 = vld [vmem:[#allocation3 + $0x1f] sm:$0xff]
      %v1035 = vld [vmem:[#allocation3 + $0x27] sm:$0xff]
      %v1036 = vld [vmem:[#allocation3 + $0x2f] sm:$0xff]
      %v1037 = vld [vmem:[#allocation3 + $0x37] sm:$0xff]
      %v1038 = vld [vmem:[#allocation3 + $0x3f] sm:$0xff]
      %v1039 = vld [vmem:[#allocation3 + $0x47] sm:$0xff]
      %v1040 = vld [vmem:[#allocation3 + $0x4f] sm:$0xff]
      %v1041 = vld [vmem:[#allocation3 + $0x57] sm:$0xff]
      %v1042 = vld [vmem:[#allocation3 + $0x5f] sm:$0xff]
      %v1043 = vld [vmem:[#allocation3 + $0x67] sm:$0xff]
      %v1044 = vld [vmem:[#allocation3 + $0x6f] sm:$0xff]
      %v1045 = vld [vmem:[#allocation3 + $0x77] sm:$0xff]
      %v1046 = vld [vmem:[#allocation3 + $0x7f] sm:$0xff]
      %v1047 = vld [vmem:[#allocation2 + $0x7] sm:$0x1]
      %v1048 = vperm.slane %v1047, 0
      %v1049 = vmul.f32 %v1032, %v1048
      %v1050 = vmul.f32 %v1033, %v1048
      %v1051 = vmul.f32 %v1034, %v1048
      %v1052 = vmul.f32 %v1035, %v1048
      %v1053 = vmul.f32 %v1036, %v1048
      %v1054 = vmul.f32 %v1037, %v1048
      %v1055 = vmul.f32 %v1038, %v1048
      %v1056 = vmul.f32 %v1039, %v1048
      %v1057 = vmul.f32 %v1040, %v1048
      %v1058 = vmul.f32 %v1041, %v1048
      %v1059 = vmul.f32 %v1042, %v1048
      %v1060 = vmul.f32 %v1043, %v1048
      %v1061 = vmul.f32 %v1044, %v1048
      %v1062 = vmul.f32 %v1045, %v1048
      %v1063 = vmul.f32 %v1046, %v1048
      %v1064 = vadd.f32 %v1017, %v1049
      %v1065 = vadd.f32 %v1018, %v1050
      %v1066 = vadd.f32 %v1019, %v1051
      %v1067 = vadd.f32 %v1020, %v1052
      %v1068 = vadd.f32 %v1021, %v1053
      %v1069 = vadd.f32 %v1022, %v1054
      %v1070 = vadd.f32 %v1023, %v1055
      %v1071 = vadd.f32 %v1024, %v1056
      %v1072 = vadd.f32 %v1025, %v1057
      %v1073 = vadd.f32 %v1026, %v1058
      %v1074 = vadd.f32 %v1027, %v1059
      %v1075 = vadd.f32 %v1028, %v1060
      %v1076 = vadd.f32 %v1029, %v1061
      %v1077 = vadd.f32 %v1030, %v1062
      %v1078 = vadd.f32 %v1031, %v1063
      %v1079 = vld [vmem:[#allocation3 + $0x78] sm:$0xff]
      %v1080 = vld [vmem:[#allocation3 + $0x80] sm:$0xff]
      %v1081 = vld [vmem:[#allocation2 + $0x8] sm:$0x1]
      %v1082 = vperm.slane %v1081, 0
      %v1083 = vmul.f32 %v705, %v1082
      %v1084 = vmul.f32 %v706, %v1082
      %v1085 = vmul.f32 %v707, %v1082
      %v1086 = vmul.f32 %v708, %v1082
      %v1087 = vmul.f32 %v709, %v1082
      %v1088 = vmul.f32 %v710, %v1082
      %v1089 = vmul.f32 %v711, %v1082
      %v1090 = vmul.f32 %v712, %v1082
      %v1091 = vmul.f32 %v713, %v1082
      %v1092 = vmul.f32 %v714, %v1082
      %v1093 = vmul.f32 %v715, %v1082
      %v1094 = vmul.f32 %v716, %v1082
      %v1095 = vmul.f32 %v717, %v1082
      %v1096 = vmul.f32 %v1079, %v1082
      %v1097 = vmul.f32 %v1080, %v1082
      %v1098 = vadd.f32 %v1064, %v1083
      %v1099 = vadd.f32 %v1065, %v1084
      %v1100 = vadd.f32 %v1066, %v1085
      %v1101 = vadd.f32 %v1067, %v1086
      %v1102 = vadd.f32 %v1068, %v1087
      %v1103 = vadd.f32 %v1069, %v1088
      %v1104 = vadd.f32 %v1070, %v1089
      %v1105 = vadd.f32 %v1071, %v1090
      %v1106 = vadd.f32 %v1072, %v1091
      %v1107 = vadd.f32 %v1073, %v1092
      %v1108 = vadd.f32 %v1074, %v1093
      %v1109 = vadd.f32 %v1075, %v1094
      %v1110 = vadd.f32 %v1076, %v1095
      %v1111 = vadd.f32 %v1077, %v1096
      %v1112 = vadd.f32 %v1078, %v1097
      %v1113 = vld [vmem:[#allocation3 + $0x79] sm:$0xff]
      %v1114 = vld [vmem:[#allocation3 + $0x81] sm:$0xff]
      %v1115 = vld [vmem:[#allocation2 + $0x9] sm:$0x1]
      %v1116 = vperm.slane %v1115, 0
      %v1117 = vmul.f32 %v752, %v1116
      %v1118 = vmul.f32 %v753, %v1116
      %v1119 = vmul.f32 %v754, %v1116
      %v1120 = vmul.f32 %v755, %v1116
      %v1121 = vmul.f32 %v756, %v1116
      %v1122 = vmul.f32 %v757, %v1116
      %v1123 = vmul.f32 %v758, %v1116
      %v1124 = vmul.f32 %v759, %v1116
      %v1125 = vmul.f32 %v760, %v1116
      %v1126 = vmul.f32 %v761, %v1116
      %v1127 = vmul.f32 %v762, %v1116
      %v1128 = vmul.f32 %v763, %v1116
      %v1129 = vmul.f32 %v764, %v1116
      %v1130 = vmul.f32 %v1113, %v1116
      %v1131 = vmul.f32 %v1114, %v1116
      %v1132 = vadd.f32 %v1098, %v1117
      %v1133 = vadd.f32 %v1099, %v1118
      %v1134 = vadd.f32 %v1100, %v1119
      %v1135 = vadd.f32 %v1101, %v1120
      %v1136 = vadd.f32 %v1102, %v1121
      %v1137 = vadd.f32 %v1103, %v1122
      %v1138 = vadd.f32 %v1104, %v1123
      %v1139 = vadd.f32 %v1105, %v1124
      %v1140 = vadd.f32 %v1106, %v1125
      %v1141 = vadd.f32 %v1107, %v1126
      %v1142 = vadd.f32 %v1108, %v1127
      %v1143 = vadd.f32 %v1109, %v1128
      %v1144 = vadd.f32 %v1110, %v1129
      %v1145 = vadd.f32 %v1111, %v1130
      %v1146 = vadd.f32 %v1112, %v1131
      %v1147 = vld [vmem:[#allocation3 + $0x7a] sm:$0xff]
      %v1148 = vld [vmem:[#allocation3 + $0x82] sm:$0xff]
      %v1149 = vld [vmem:[#allocation3 + $0x8a] sm:$0xff]
      %v1150 = vld [vmem:[#allocation2 + $0xa] sm:$0x1]
      %v1151 = vperm.slane %v1150, 0
      %v1152 = vmul.f32 %v800, %v1151
      %v1153 = vmul.f32 %v801, %v1151
      %v1154 = vmul.f32 %v802, %v1151
      %v1155 = vmul.f32 %v803, %v1151
      %v1156 = vmul.f32 %v804, %v1151
      %v1157 = vmul.f32 %v805, %v1151
      %v1158 = vmul.f32 %v806, %v1151
      %v1159 = vmul.f32 %v807, %v1151
      %v1160 = vmul.f32 %v808, %v1151
      %v1161 = vmul.f32 %v809, %v1151
      %v1162 = vmul.f32 %v810, %v1151
      %v1163 = vmul.f32 %v811, %v1151
      %v1164 = vmul.f32 %v1147, %v1151
      %v1165 = vmul.f32 %v1148, %v1151
      %v1166 = vmul.f32 %v1149, %v1151
      %v1167 = vadd.f32 %v1132, %v1152
      %v1168 = vadd.f32 %v1133, %v1153
      %v1169 = vadd.f32 %v1134, %v1154
      %v1170 = vadd.f32 %v1135, %v1155
      %v1171 = vadd.f32 %v1136, %v1156
      %v1172 = vadd.f32 %v1137, %v1157
      %v1173 = vadd.f32 %v1138, %v1158
      %v1174 = vadd.f32 %v1139, %v1159
      %v1175 = vadd.f32 %v1140, %v1160
      %v1176 = vadd.f32 %v1141, %v1161
      %v1177 = vadd.f32 %v1142, %v1162
      %v1178 = vadd.f32 %v1143, %v1163
      %v1179 = vadd.f32 %v1144, %v1164
      %v1180 = vadd.f32 %v1145, %v1165
      %v1181 = vadd.f32 %v1146, %v1166
      %v1182 = vld [vmem:[#allocation3 + $0x7b] sm:$0xff]
      %v1183 = vld [vmem:[#allocation3 + $0x83] sm:$0xff]
      %v1184 = vld [vmem:[#allocation3 + $0x8b] sm:$0xff]
      %v1185 = vld [vmem:[#allocation2 + $0xb] sm:$0x1]
      %v1186 = vperm.slane %v1185, 0
      %v1187 = vmul.f32 %v847, %v1186
      %v1188 = vmul.f32 %v848, %v1186
      %v1189 = vmul.f32 %v849, %v1186
      %v1190 = vmul.f32 %v850, %v1186
      %v1191 = vmul.f32 %v851, %v1186
      %v1192 = vmul.f32 %v852, %v1186
      %v1193 = vmul.f32 %v853, %v1186
      %v1194 = vmul.f32 %v854, %v1186
      %v1195 = vmul.f32 %v855, %v1186
      %v1196 = vmul.f32 %v856, %v1186
      %v1197 = vmul.f32 %v857, %v1186
      %v1198 = vmul.f32 %v858, %v1186
      %v1199 = vmul.f32 %v1182, %v1186
      %v1200 = vmul.f32 %v1183, %v1186
      %v1201 = vmul.f32 %v1184, %v1186
      %v1202 = vadd.f32 %v1167, %v1187
      %v1203 = vadd.f32 %v1168, %v1188
      %v1204 = vadd.f32 %v1169, %v1189
      %v1205 = vadd.f32 %v1170, %v1190
      %v1206 = vadd.f32 %v1171, %v1191
      %v1207 = vadd.f32 %v1172, %v1192
      %v1208 = vadd.f32 %v1173, %v1193
      %v1209 = vadd.f32 %v1174, %v1194
      %v1210 = vadd.f32 %v1175, %v1195
      %v1211 = vadd.f32 %v1176, %v1196
      %v1212 = vadd.f32 %v1177, %v1197
      %v1213 = vadd.f32 %v1178, %v1198
      %v1214 = vadd.f32 %v1179, %v1199
      %v1215 = vadd.f32 %v1180, %v1200
      %v1216 = vadd.f32 %v1181, %v1201
      %v1217 = vld [vmem:[#allocation3 + $0x7c] sm:$0xff]
      %v1218 = vld [vmem:[#allocation3 + $0x84] sm:$0xff]
      %v1219 = vld [vmem:[#allocation3 + $0x8c] sm:$0xff]
      %v1220 = vld [vmem:[#allocation2 + $0xc] sm:$0x1]
      %v1221 = vperm.slane %v1220, 0
      %v1222 = vmul.f32 %v894, %v1221
      %v1223 = vmul.f32 %v895, %v1221
      %v1224 = vmul.f32 %v896, %v1221
      %v1225 = vmul.f32 %v897, %v1221
      %v1226 = vmul.f32 %v898, %v1221
      %v1227 = vmul.f32 %v899, %v1221
      %v1228 = vmul.f32 %v900, %v1221
      %v1229 = vmul.f32 %v901, %v1221
      %v1230 = vmul.f32 %v902, %v1221
      %v1231 = vmul.f32 %v903, %v1221
      %v1232 = vmul.f32 %v904, %v1221
      %v1233 = vmul.f32 %v905, %v1221
      %v1234 = vmul.f32 %v1217, %v1221
      %v1235 = vmul.f32 %v1218, %v1221
      %v1236 = vmul.f32 %v1219, %v1221
      %v1237 = vadd.f32 %v1202, %v1222
      %v1238 = vadd.f32 %v1203, %v1223
      %v1239 = vadd.f32 %v1204, %v1224
      %v1240 = vadd.f32 %v1205, %v1225
      %v1241 = vadd.f32 %v1206, %v1226
      %v1242 = vadd.f32 %v1207, %v1227
      %v1243 = vadd.f32 %v1208, %v1228
      %v1244 = vadd.f32 %v1209, %v1229
      %v1245 = vadd.f32 %v1210, %v1230
      %v1246 = vadd.f32 %v1211, %v1231
      %v1247 = vadd.f32 %v1212, %v1232
      %v1248 = vadd.f32 %v1213, %v1233
      %v1249 = vadd.f32 %v1214, %v1234
      %v1250 = vadd.f32 %v1215, %v1235
      %v1251 = vadd.f32 %v1216, %v1236
      %v1252 = vld [vmem:[#allocation3 + $0x85] sm:$0xff]
      %v1253 = vld [vmem:[#allocation3 + $0x8d] sm:$0xff]
      %v1254 = vld [vmem:[#allocation2 + $0xd] sm:$0x1]
      %v1255 = vperm.slane %v1254, 0
      %v1256 = vmul.f32 %v940, %v1255
      %v1257 = vmul.f32 %v941, %v1255
      %v1258 = vmul.f32 %v942, %v1255
      %v1259 = vmul.f32 %v943, %v1255
      %v1260 = vmul.f32 %v944, %v1255
      %v1261 = vmul.f32 %v945, %v1255
      %v1262 = vmul.f32 %v946, %v1255
      %v1263 = vmul.f32 %v947, %v1255
      %v1264 = vmul.f32 %v948, %v1255
      %v1265 = vmul.f32 %v949, %v1255
      %v1266 = vmul.f32 %v950, %v1255
      %v1267 = vmul.f32 %v951, %v1255
      %v1268 = vmul.f32 %v952, %v1255
      %v1269 = vmul.f32 %v1252, %v1255
      %v1270 = vmul.f32 %v1253, %v1255
      %v1271 = vadd.f32 %v1237, %v1256
      %v1272 = vadd.f32 %v1238, %v1257
      %v1273 = vadd.f32 %v1239, %v1258
      %v1274 = vadd.f32 %v1240, %v1259
      %v1275 = vadd.f32 %v1241, %v1260
      %v1276 = vadd.f32 %v1242, %v1261
      %v1277 = vadd.f32 %v1243, %v1262
      %v1278 = vadd.f32 %v1244, %v1263
      %v1279 = vadd.f32 %v1245, %v1264
      %v1280 = vadd.f32 %v1246, %v1265
      %v1281 = vadd.f32 %v1247, %v1266
      %v1282 = vadd.f32 %v1248, %v1267
      %v1283 = vadd.f32 %v1249, %v1268
      %v1284 = vadd.f32 %v1250, %v1269
      %v1285 = vadd.f32 %v1251, %v1270
      %v1286 = vld [vmem:[#allocation3 + $0x86] sm:$0xff]
      %v1287 = vld [vmem:[#allocation3 + $0x8e] sm:$0xff]
      %v1288 = vld [vmem:[#allocation2 + $0xe] sm:$0x1]
      %v1289 = vperm.slane %v1288, 0
      %v1290 = vmul.f32 %v987, %v1289
      %v1291 = vmul.f32 %v988, %v1289
      %v1292 = vmul.f32 %v989, %v1289
      %v1293 = vmul.f32 %v990, %v1289
      %v1294 = vmul.f32 %v991, %v1289
      %v1295 = vmul.f32 %v992, %v1289
      %v1296 = vmul.f32 %v993, %v1289
      %v1297 = vmul.f32 %v994, %v1289
      %v1298 = vmul.f32 %v995, %v1289
      %v1299 = vmul.f32 %v996, %v1289
      %v1300 = vmul.f32 %v997, %v1289
      %v1301 = vmul.f32 %v998, %v1289
      %v1302 = vmul.f32 %v999, %v1289
      %v1303 = vmul.f32 %v1286, %v1289
      %v1304 = vmul.f32 %v1287, %v1289
      %v1305 = vadd.f32 %v1271, %v1290
      %v1306 = vadd.f32 %v1272, %v1291
      %v1307 = vadd.f32 %v1273, %v1292
      %v1308 = vadd.f32 %v1274, %v1293
      %v1309 = vadd.f32 %v1275, %v1294
      %v1310 = vadd.f32 %v1276, %v1295
      %v1311 = vadd.f32 %v1277, %v1296
      %v1312 = vadd.f32 %v1278, %v1297
      %v1313 = vadd.f32 %v1279, %v1298
      %v1314 = vadd.f32 %v1280, %v1299
      %v1315 = vadd.f32 %v1281, %v1300
      %v1316 = vadd.f32 %v1282, %v1301
      %v1317 = vadd.f32 %v1283, %v1302
      %v1318 = vadd.f32 %v1284, %v1303
      %v1319 = vadd.f32 %v1285, %v1304
      %v1320 = vld [vmem:[#allocation3 + $0x87] sm:$0xff]
      %v1321 = vld [vmem:[#allocation3 + $0x8f] sm:$0xff]
      %v1322 = vld [vmem:[#allocation3 + $0x97] sm:$0xff]
      %v1323 = vld [vmem:[#allocation2 + $0xf] sm:$0x1]
      %v1324 = vperm.slane %v1323, 0
      %v1325 = vmul.f32 %v1035, %v1324
      %v1326 = vmul.f32 %v1036, %v1324
      %v1327 = vmul.f32 %v1037, %v1324
      %v1328 = vmul.f32 %v1038, %v1324
      %v1329 = vmul.f32 %v1039, %v1324
      %v1330 = vmul.f32 %v1040, %v1324
      %v1331 = vmul.f32 %v1041, %v1324
      %v1332 = vmul.f32 %v1042, %v1324
      %v1333 = vmul.f32 %v1043, %v1324
      %v1334 = vmul.f32 %v1044, %v1324
      %v1335 = vmul.f32 %v1045, %v1324
      %v1336 = vmul.f32 %v1046, %v1324
      %v1337 = vmul.f32 %v1320, %v1324
      %v1338 = vmul.f32 %v1321, %v1324
      %v1339 = vmul.f32 %v1322, %v1324
      %v1340 = vadd.f32 %v1305, %v1325
      %v1341 = vadd.f32 %v1306, %v1326
      %v1342 = vadd.f32 %v1307, %v1327
      %v1343 = vadd.f32 %v1308, %v1328
      %v1344 = vadd.f32 %v1309, %v1329
      %v1345 = vadd.f32 %v1310, %v1330
      %v1346 = vadd.f32 %v1311, %v1331
      %v1347 = vadd.f32 %v1312, %v1332
      %v1348 = vadd.f32 %v1313, %v1333
      %v1349 = vadd.f32 %v1314, %v1334
      %v1350 = vadd.f32 %v1315, %v1335
      %v1351 = vadd.f32 %v1316, %v1336
      %v1352 = vadd.f32 %v1317, %v1337
      %v1353 = vadd.f32 %v1318, %v1338
      %v1354 = vadd.f32 %v1319, %v1339
      %v1355 = vld [vmem:[#allocation3 + $0x88] sm:$0xff]
      %v1356 = vld [vmem:[#allocation3 + $0x90] sm:$0xff]
      %v1357 = vld [vmem:[#allocation3 + $0x98] sm:$0xff]
      %v1358 = vld [vmem:[#allocation2 + $0x10] sm:$0x1]
      %v1359 = vperm.slane %v1358, 0
      %v1360 = vmul.f32 %v708, %v1359
      %v1361 = vmul.f32 %v709, %v1359
      %v1362 = vmul.f32 %v710, %v1359
      %v1363 = vmul.f32 %v711, %v1359
      %v1364 = vmul.f32 %v712, %v1359
      %v1365 = vmul.f32 %v713, %v1359
      %v1366 = vmul.f32 %v714, %v1359
      %v1367 = vmul.f32 %v715, %v1359
      %v1368 = vmul.f32 %v716, %v1359
      %v1369 = vmul.f32 %v717, %v1359
      %v1370 = vmul.f32 %v1079, %v1359
      %v1371 = vmul.f32 %v1080, %v1359
      %v1372 = vmul.f32 %v1355, %v1359
      %v1373 = vmul.f32 %v1356, %v1359
      %v1374 = vmul.f32 %v1357, %v1359
      %v1375 = vadd.f32 %v1340, %v1360
      %v1376 = vadd.f32 %v1341, %v1361
      %v1377 = vadd.f32 %v1342, %v1362
      %v1378 = vadd.f32 %v1343, %v1363
      %v1379 = vadd.f32 %v1344, %v1364
      %v1380 = vadd.f32 %v1345, %v1365
      %v1381 = vadd.f32 %v1346, %v1366
      %v1382 = vadd.f32 %v1347, %v1367
      %v1383 = vadd.f32 %v1348, %v1368
      %v1384 = vadd.f32 %v1349, %v1369
      %v1385 = vadd.f32 %v1350, %v1370
      %v1386 = vadd.f32 %v1351, %v1371
      %v1387 = vadd.f32 %v1352, %v1372
      %v1388 = vadd.f32 %v1353, %v1373
      %v1389 = vadd.f32 %v1354, %v1374
      %v1390 = vld [vmem:[#allocation3 + $0x89] sm:$0xff]
      %v1391 = vld [vmem:[#allocation3 + $0x91] sm:$0xff]
      %v1392 = vld [vmem:[#allocation3 + $0x99] sm:$0xff]
      %v1393 = vld [vmem:[#allocation2 + $0x11] sm:$0x1]
      %v1394 = vperm.slane %v1393, 0
      %v1395 = vmul.f32 %v755, %v1394
      %v1396 = vmul.f32 %v756, %v1394
      %v1397 = vmul.f32 %v757, %v1394
      %v1398 = vmul.f32 %v758, %v1394
      %v1399 = vmul.f32 %v759, %v1394
      %v1400 = vmul.f32 %v760, %v1394
      %v1401 = vmul.f32 %v761, %v1394
      %v1402 = vmul.f32 %v762, %v1394
      %v1403 = vmul.f32 %v763, %v1394
      %v1404 = vmul.f32 %v764, %v1394
      %v1405 = vmul.f32 %v1113, %v1394
      %v1406 = vmul.f32 %v1114, %v1394
      %v1407 = vmul.f32 %v1390, %v1394
      %v1408 = vmul.f32 %v1391, %v1394
      %v1409 = vmul.f32 %v1392, %v1394
      %v1410 = vadd.f32 %v1375, %v1395
      %v1411 = vadd.f32 %v1376, %v1396
      %v1412 = vadd.f32 %v1377, %v1397
      %v1413 = vadd.f32 %v1378, %v1398
      %v1414 = vadd.f32 %v1379, %v1399
      %v1415 = vadd.f32 %v1380, %v1400
      %v1416 = vadd.f32 %v1381, %v1401
      %v1417 = vadd.f32 %v1382, %v1402
      %v1418 = vadd.f32 %v1383, %v1403
      %v1419 = vadd.f32 %v1384, %v1404
      %v1420 = vadd.f32 %v1385, %v1405
      %v1421 = vadd.f32 %v1386, %v1406
      %v1422 = vadd.f32 %v1387, %v1407
      %v1423 = vadd.f32 %v1388, %v1408
      %v1424 = vadd.f32 %v1389, %v1409
      %v1425 = vld [vmem:[#allocation3 + $0x92] sm:$0xff]
      %v1426 = vld [vmem:[#allocation3 + $0x9a] sm:$0xff]
      %v1427 = vld [vmem:[#allocation2 + $0x12] sm:$0x1]
      %v1428 = vperm.slane %v1427, 0
      %v1429 = vmul.f32 %v802, %v1428
      %v1430 = vmul.f32 %v803, %v1428
      %v1431 = vmul.f32 %v804, %v1428
      %v1432 = vmul.f32 %v805, %v1428
      %v1433 = vmul.f32 %v806, %v1428
      %v1434 = vmul.f32 %v807, %v1428
      %v1435 = vmul.f32 %v808, %v1428
      %v1436 = vmul.f32 %v809, %v1428
      %v1437 = vmul.f32 %v810, %v1428
      %v1438 = vmul.f32 %v811, %v1428
      %v1439 = vmul.f32 %v1147, %v1428
      %v1440 = vmul.f32 %v1148, %v1428
      %v1441 = vmul.f32 %v1149, %v1428
      %v1442 = vmul.f32 %v1425, %v1428
      %v1443 = vmul.f32 %v1426, %v1428
      %v1444 = vadd.f32 %v1410, %v1429
      %v1445 = vadd.f32 %v1411, %v1430
      %v1446 = vadd.f32 %v1412, %v1431
      %v1447 = vadd.f32 %v1413, %v1432
      %v1448 = vadd.f32 %v1414, %v1433
      %v1449 = vadd.f32 %v1415, %v1434
      %v1450 = vadd.f32 %v1416, %v1435
      %v1451 = vadd.f32 %v1417, %v1436
      %v1452 = vadd.f32 %v1418, %v1437
      %v1453 = vadd.f32 %v1419, %v1438
      %v1454 = vadd.f32 %v1420, %v1439
      %v1455 = vadd.f32 %v1421, %v1440
      %v1456 = vadd.f32 %v1422, %v1441
      %v1457 = vadd.f32 %v1423, %v1442
      %v1458 = vadd.f32 %v1424, %v1443
      %v1459 = vld [vmem:[#allocation3 + $0x93] sm:$0xff]
      %v1460 = vld [vmem:[#allocation3 + $0x9b] sm:$0xff]
      %v1461 = vld [vmem:[#allocation2 + $0x13] sm:$0x1]
      %v1462 = vperm.slane %v1461, 0
      %v1463 = vmul.f32 %v849, %v1462
      %v1464 = vmul.f32 %v850, %v1462
      %v1465 = vmul.f32 %v851, %v1462
      %v1466 = vmul.f32 %v852, %v1462
      %v1467 = vmul.f32 %v853, %v1462
      %v1468 = vmul.f32 %v854, %v1462
      %v1469 = vmul.f32 %v855, %v1462
      %v1470 = vmul.f32 %v856, %v1462
      %v1471 = vmul.f32 %v857, %v1462
      %v1472 = vmul.f32 %v858, %v1462
      %v1473 = vmul.f32 %v1182, %v1462
      %v1474 = vmul.f32 %v1183, %v1462
      %v1475 = vmul.f32 %v1184, %v1462
      %v1476 = vmul.f32 %v1459, %v1462
      %v1477 = vmul.f32 %v1460, %v1462
      %v1478 = vadd.f32 %v1444, %v1463
      %v1479 = vadd.f32 %v1445, %v1464
      %v1480 = vadd.f32 %v1446, %v1465
      %v1481 = vadd.f32 %v1447, %v1466
      %v1482 = vadd.f32 %v1448, %v1467
      %v1483 = vadd.f32 %v1449, %v1468
      %v1484 = vadd.f32 %v1450, %v1469
      %v1485 = vadd.f32 %v1451, %v1470
      %v1486 = vadd.f32 %v1452, %v1471
      %v1487 = vadd.f32 %v1453, %v1472
      %v1488 = vadd.f32 %v1454, %v1473
      %v1489 = vadd.f32 %v1455, %v1474
      %v1490 = vadd.f32 %v1456, %v1475
      %v1491 = vadd.f32 %v1457, %v1476
      %v1492 = vadd.f32 %v1458, %v1477
      %v1493 = vld [vmem:[#allocation3 + $0x94] sm:$0xff]
      %v1494 = vld [vmem:[#allocation3 + $0x9c] sm:$0xff]
      %v1495 = vld [vmem:[#allocation3 + $0xa4] sm:$0xff]
      %v1496 = vld [vmem:[#allocation2 + $0x14] sm:$0x1]
      %v1497 = vperm.slane %v1496, 0
      %v1498 = vmul.f32 %v897, %v1497
      %v1499 = vmul.f32 %v898, %v1497
      %v1500 = vmul.f32 %v899, %v1497
      %v1501 = vmul.f32 %v900, %v1497
      %v1502 = vmul.f32 %v901, %v1497
      %v1503 = vmul.f32 %v902, %v1497
      %v1504 = vmul.f32 %v903, %v1497
      %v1505 = vmul.f32 %v904, %v1497
      %v1506 = vmul.f32 %v905, %v1497
      %v1507 = vmul.f32 %v1217, %v1497
      %v1508 = vmul.f32 %v1218, %v1497
      %v1509 = vmul.f32 %v1219, %v1497
      %v1510 = vmul.f32 %v1493, %v1497
      %v1511 = vmul.f32 %v1494, %v1497
      %v1512 = vmul.f32 %v1495, %v1497
      %v1513 = vadd.f32 %v1478, %v1498
      %v1514 = vadd.f32 %v1479, %v1499
      %v1515 = vadd.f32 %v1480, %v1500
      %v1516 = vadd.f32 %v1481, %v1501
      %v1517 = vadd.f32 %v1482, %v1502
      %v1518 = vadd.f32 %v1483, %v1503
      %v1519 = vadd.f32 %v1484, %v1504
      %v1520 = vadd.f32 %v1485, %v1505
      %v1521 = vadd.f32 %v1486, %v1506
      %v1522 = vadd.f32 %v1487, %v1507
      %v1523 = vadd.f32 %v1488, %v1508
      %v1524 = vadd.f32 %v1489, %v1509
      %v1525 = vadd.f32 %v1490, %v1510
      %v1526 = vadd.f32 %v1491, %v1511
      %v1527 = vadd.f32 %v1492, %v1512
      %v1528 = vld [vmem:[#allocation3 + $0x95] sm:$0xff]
      %v1529 = vld [vmem:[#allocation3 + $0x9d] sm:$0xff]
      %v1530 = vld [vmem:[#allocation3 + $0xa5] sm:$0xff]
      %v1531 = vld [vmem:[#allocation2 + $0x15] sm:$0x1]
      %v1532 = vperm.slane %v1531, 0
      %v1533 = vmul.f32 %v943, %v1532
      %v1534 = vmul.f32 %v944, %v1532
      %v1535 = vmul.f32 %v945, %v1532
      %v1536 = vmul.f32 %v946, %v1532
      %v1537 = vmul.f32 %v947, %v1532
      %v1538 = vmul.f32 %v948, %v1532
      %v1539 = vmul.f32 %v949, %v1532
      %v1540 = vmul.f32 %v950, %v1532
      %v1541 = vmul.f32 %v951, %v1532
      %v1542 = vmul.f32 %v952, %v1532
      %v1543 = vmul.f32 %v1252, %v1532
      %v1544 = vmul.f32 %v1253, %v1532
      %v1545 = vmul.f32 %v1528, %v1532
      %v1546 = vmul.f32 %v1529, %v1532
      %v1547 = vmul.f32 %v1530, %v1532
      %v1548 = vadd.f32 %v1513, %v1533
      %v1549 = vadd.f32 %v1514, %v1534
      %v1550 = vadd.f32 %v1515, %v1535
      %v1551 = vadd.f32 %v1516, %v1536
      %v1552 = vadd.f32 %v1517, %v1537
      %v1553 = vadd.f32 %v1518, %v1538
      %v1554 = vadd.f32 %v1519, %v1539
      %v1555 = vadd.f32 %v1520, %v1540
      %v1556 = vadd.f32 %v1521, %v1541
      %v1557 = vadd.f32 %v1522, %v1542
      %v1558 = vadd.f32 %v1523, %v1543
      %v1559 = vadd.f32 %v1524, %v1544
      %v1560 = vadd.f32 %v1525, %v1545
      %v1561 = vadd.f32 %v1526, %v1546
      %v1562 = vadd.f32 %v1527, %v1547
      %v1563 = vld [vmem:[#allocation3 + $0x96] sm:$0xff]
      %v1564 = vld [vmem:[#allocation3 + $0x9e] sm:$0xff]
      %v1565 = vld [vmem:[#allocation3 + $0xa6] sm:$0xff]
      %v1566 = vld [vmem:[#allocation2 + $0x16] sm:$0x1]
      %v1567 = vperm.slane %v1566, 0
      %v1568 = vmul.f32 %v990, %v1567
      %v1569 = vmul.f32 %v991, %v1567
      %v1570 = vmul.f32 %v992, %v1567
      %v1571 = vmul.f32 %v993, %v1567
      %v1572 = vmul.f32 %v994, %v1567
      %v1573 = vmul.f32 %v995, %v1567
      %v1574 = vmul.f32 %v996, %v1567
      %v1575 = vmul.f32 %v997, %v1567
      %v1576 = vmul.f32 %v998, %v1567
      %v1577 = vmul.f32 %v999, %v1567
      %v1578 = vmul.f32 %v1286, %v1567
      %v1579 = vmul.f32 %v1287, %v1567
      %v1580 = vmul.f32 %v1563, %v1567
      %v1581 = vmul.f32 %v1564, %v1567
      %v1582 = vmul.f32 %v1565, %v1567
      %v1583 = vadd.f32 %v1548, %v1568
      %v1584 = vadd.f32 %v1549, %v1569
      %v1585 = vadd.f32 %v1550, %v1570
      %v1586 = vadd.f32 %v1551, %v1571
      %v1587 = vadd.f32 %v1552, %v1572
      %v1588 = vadd.f32 %v1553, %v1573
      %v1589 = vadd.f32 %v1554, %v1574
      %v1590 = vadd.f32 %v1555, %v1575
      %v1591 = vadd.f32 %v1556, %v1576
      %v1592 = vadd.f32 %v1557, %v1577
      %v1593 = vadd.f32 %v1558, %v1578
      %v1594 = vadd.f32 %v1559, %v1579
      %v1595 = vadd.f32 %v1560, %v1580
      %v1596 = vadd.f32 %v1561, %v1581
      %v1597 = vadd.f32 %v1562, %v1582
      %v1598 = vld [vmem:[#allocation3 + $0x9f] sm:$0xff]
      %v1599 = vld [vmem:[#allocation3 + $0xa7] sm:$0xff]
      %v1600 = vld [vmem:[#allocation2 + $0x17] sm:$0x1]
      %v1601 = vperm.slane %v1600, 0
      %v1602 = vmul.f32 %v1037, %v1601
      %v1603 = vmul.f32 %v1038, %v1601
      %v1604 = vmul.f32 %v1039, %v1601
      %v1605 = vmul.f32 %v1040, %v1601
      %v1606 = vmul.f32 %v1041, %v1601
      %v1607 = vmul.f32 %v1042, %v1601
      %v1608 = vmul.f32 %v1043, %v1601
      %v1609 = vmul.f32 %v1044, %v1601
      %v1610 = vmul.f32 %v1045, %v1601
      %v1611 = vmul.f32 %v1046, %v1601
      %v1612 = vmul.f32 %v1320, %v1601
      %v1613 = vmul.f32 %v1321, %v1601
      %v1614 = vmul.f32 %v1322, %v1601
      %v1615 = vmul.f32 %v1598, %v1601
      %v1616 = vmul.f32 %v1599, %v1601
      %v1617 = vadd.f32 %v1583, %v1602
      %v1618 = vadd.f32 %v1584, %v1603
      %v1619 = vadd.f32 %v1585, %v1604
      %v1620 = vadd.f32 %v1586, %v1605
      %v1621 = vadd.f32 %v1587, %v1606
      %v1622 = vadd.f32 %v1588, %v1607
      %v1623 = vadd.f32 %v1589, %v1608
      %v1624 = vadd.f32 %v1590, %v1609
      %v1625 = vadd.f32 %v1591, %v1610
      %v1626 = vadd.f32 %v1592, %v1611
      %v1627 = vadd.f32 %v1593, %v1612
      %v1628 = vadd.f32 %v1594, %v1613
      %v1629 = vadd.f32 %v1595, %v1614
      %v1630 = vadd.f32 %v1596, %v1615
      %v1631 = vadd.f32 %v1597, %v1616
      %v1632 = vld [vmem:[#allocation3 + $0xa0] sm:$0xff]
      %v1633 = vld [vmem:[#allocation3 + $0xa8] sm:$0xff]
      %v1634 = vld [vmem:[#allocation2 + $0x18] sm:$0x1]
      %v1635 = vperm.slane %v1634, 0
      %v1636 = vmul.f32 %v710, %v1635
      %v1637 = vmul.f32 %v711, %v1635
      %v1638 = vmul.f32 %v712, %v1635
      %v1639 = vmul.f32 %v713, %v1635
      %v1640 = vmul.f32 %v714, %v1635
      %v1641 = vmul.f32 %v715, %v1635
      %v1642 = vmul.f32 %v716, %v1635
      %v1643 = vmul.f32 %v717, %v1635
      %v1644 = vmul.f32 %v1079, %v1635
      %v1645 = vmul.f32 %v1080, %v1635
      %v1646 = vmul.f32 %v1355, %v1635
      %v1647 = vmul.f32 %v1356, %v1635
      %v1648 = vmul.f32 %v1357, %v1635
      %v1649 = vmul.f32 %v1632, %v1635
      %v1650 = vmul.f32 %v1633, %v1635
      %v1651 = vadd.f32 %v1617, %v1636
      %v1652 = vadd.f32 %v1618, %v1637
      %v1653 = vadd.f32 %v1619, %v1638
      %v1654 = vadd.f32 %v1620, %v1639
      %v1655 = vadd.f32 %v1621, %v1640
      %v1656 = vadd.f32 %v1622, %v1641
      %v1657 = vadd.f32 %v1623, %v1642
      %v1658 = vadd.f32 %v1624, %v1643
      %v1659 = vadd.f32 %v1625, %v1644
      %v1660 = vadd.f32 %v1626, %v1645
      %v1661 = vadd.f32 %v1627, %v1646
      %v1662 = vadd.f32 %v1628, %v1647
      %v1663 = vadd.f32 %v1629, %v1648
      %v1664 = vadd.f32 %v1630, %v1649
      %v1665 = vadd.f32 %v1631, %v1650
      %v1666 = vpack.c.bf16 %v1652, %v1651
      %v1667 = vpack.c.bf16 %v1654, %v1653
      %v1668 = vpack.c.bf16 %v1656, %v1655
      %v1669 = vpack.c.bf16 %v1658, %v1657
      %v1670 = vpack.c.bf16 %v1660, %v1659
      %v1671 = vpack.c.bf16 %v1662, %v1661
      %v1672 = vpack.c.bf16 %v1664, %v1663
      %v1673 = vpack.c.bf16 %v1665, %v1665
      %v1674 = vld [vmem:[%s6] sm:$0xf]
      %v1675 = vld [vmem:[%s6 + $0x4] sm:$0xf]
      %v1676 = vld [vmem:[%s6 + $0x8] sm:$0xf]
      %v1677 = vld [vmem:[%s6 + $0xc] sm:$0xf]
      %v1678 = vld [vmem:[%s7] sm:$0x1]
      %v1680 = vperm.slane %v1678, 0
      %v1686 = vunpack.c.l.b16 %v1674
      %v1687 = vunpack.c.l.b16 %v1675
      %v1688 = vunpack.c.l.b16 %v1676
      %v1689 = vunpack.c.l.b16 %v1677
      %v1690 = vpack.c.b16 %v1687, %v1686
      %v1691 = vpack.c.b16 %v1689, %v1688
      %v1695 = vsel %vm453, %v1666, 0
      %v1698 = vsel %vm453, %v1667, 0
      %v1701 = vsel %vm453, %v1668, 0
      %v1704 = vsel %vm453, %v1669, 0
      %v1707 = vsel %vm453, %v1670, 0
      %v1710 = vsel %vm453, %v1671, 0
      %v1713 = vsel %vm453, %v1672, 0
      %v1716 = vsel %vm453, %v1673, 0
      %1718 = vmatpush.bf16.msra.mxu0 0
      %1719 = vmatpush.bf16.msra.mxu0 0
      %1720 = vmatpush.bf16.msra.mxu0 0
      %1721 = vmatpush.bf16.msra.mxu0 0
      %1722 = vmatpush.bf16.msra.mxu0 0
      %1723 = vmatpush.bf16.msra.mxu0 0
      %1724 = vmatpush.bf16.msra.mxu0 %v1691
      %1725 = vmatpush.bf16.msra.mxu0 %v1690
      %1726 = vmatmul.bf16.gmra.mxu0 %v1695
      %v1727 = vpop.f32.mrf.mxu0
      %v1728 = vadd.f32 %v1680, %v1727
      %v1729 = vpop.f32.mrf.mxu0
      %v1730 = vadd.f32 %v1680, %v1729
      %1731 = vmatmul.bf16.gmra.mxu0 %v1698
      %v1732 = vpop.f32.mrf.mxu0
      %v1733 = vadd.f32 %v1680, %v1732
      %v1734 = vpop.f32.mrf.mxu0
      %v1735 = vadd.f32 %v1680, %v1734
      %1736 = vmatmul.bf16.gmra.mxu0 %v1701
      %v1737 = vpop.f32.mrf.mxu0
      %v1738 = vadd.f32 %v1680, %v1737
      %v1739 = vpop.f32.mrf.mxu0
      %v1740 = vadd.f32 %v1680, %v1739
      %1741 = vmatmul.bf16.gmra.mxu0 %v1704
      %v1742 = vpop.f32.mrf.mxu0
      %v1743 = vadd.f32 %v1680, %v1742
      %v1744 = vpop.f32.mrf.mxu0
      %v1745 = vadd.f32 %v1680, %v1744
      %1746 = vmatmul.bf16.gmra.mxu0 %v1707
      %v1747 = vpop.f32.mrf.mxu0
      %v1748 = vadd.f32 %v1680, %v1747
      %v1749 = vpop.f32.mrf.mxu0
      %v1750 = vadd.f32 %v1680, %v1749
      %1751 = vmatmul.bf16.gmra.mxu0 %v1710
      %v1752 = vpop.f32.mrf.mxu0
      %v1753 = vadd.f32 %v1680, %v1752
      %v1754 = vpop.f32.mrf.mxu0
      %v1755 = vadd.f32 %v1680, %v1754
      %1756 = vmatmul.bf16.gmra.mxu0 %v1713
      %v1757 = vpop.f32.mrf.mxu0
      %v1758 = vadd.f32 %v1680, %v1757
      %v1759 = vpop.f32.mrf.mxu0
      %v1760 = vadd.f32 %v1680, %v1759
      %1761 = vmatmul.bf16.gmra.mxu0 %v1716
      %v1762 = vpop.f32.mrf.mxu0
      %v1763 = vadd.f32 %v1680, %v1762
      %v1764 = vpop.f32.mrf.mxu0
      %1765 = vdwg.mxu0
      %v1766 = vmax.f32 %v1728, 0.0
      %v1767 = vmax.f32 %v1730, 0.0
      %v1768 = vmax.f32 %v1733, 0.0
      %v1769 = vmax.f32 %v1735, 0.0
      %v1770 = vmax.f32 %v1738, 0.0
      %v1771 = vmax.f32 %v1740, 0.0
      %v1772 = vmax.f32 %v1743, 0.0
      %v1773 = vmax.f32 %v1745, 0.0
      %v1774 = vmax.f32 %v1748, 0.0
      %v1775 = vmax.f32 %v1750, 0.0
      %v1776 = vmax.f32 %v1753, 0.0
      %v1777 = vmax.f32 %v1755, 0.0
      %v1778 = vmax.f32 %v1758, 0.0
      %v1779 = vmax.f32 %v1760, 0.0
      %v1780 = vmax.f32 %v1763, 0.0
      %v1781 = vpack.c.bf16 %v1767, %v1766
      %v1782 = vpack.c.bf16 %v1769, %v1768
      %v1783 = vpack.c.bf16 %v1771, %v1770
      %v1784 = vpack.c.bf16 %v1773, %v1772
      %v1785 = vpack.c.bf16 %v1775, %v1774
      %v1786 = vpack.c.bf16 %v1777, %v1776
      %v1787 = vpack.c.bf16 %v1779, %v1778
      %v1788 = vpack.c.bf16 %v1780, %v1780
      %v1789 = vld [vmem:[%s8] sm:$0xf]
      %v1790 = vld [vmem:[%s8 + $0x4] sm:$0xf]
      %v1791 = vld [vmem:[%s8 + $0x8] sm:$0xf]
      %v1792 = vld [vmem:[%s8 + $0xc] sm:$0xf]
      %v1793 = vld [vmem:[%s9] sm:$0x1]
      %v1795 = vperm.slane %v1793, 0
      %v1801 = vunpack.c.l.b16 %v1789
      %v1802 = vunpack.c.l.b16 %v1790
      %v1803 = vunpack.c.l.b16 %v1791
      %v1804 = vunpack.c.l.b16 %v1792
      %v1805 = vpack.c.b16 %v1802, %v1801
      %v1806 = vpack.c.b16 %v1804, %v1803
      %v1810 = vsel %vm453, %v1781, 0
      %v1813 = vsel %vm453, %v1782, 0
      %v1816 = vsel %vm453, %v1783, 0
      %v1819 = vsel %vm453, %v1784, 0
      %v1822 = vsel %vm453, %v1785, 0
      %v1825 = vsel %vm453, %v1786, 0
      %v1828 = vsel %vm453, %v1787, 0
      %v1831 = vsel %vm453, %v1788, 0
      %1833 = vmatpush.bf16.msra.mxu0 0
      %1834 = vmatpush.bf16.msra.mxu0 0
      %1835 = vmatpush.bf16.msra.mxu0 0
      %1836 = vmatpush.bf16.msra.mxu0 0
      %1837 = vmatpush.bf16.msra.mxu0 0
      %1838 = vmatpush.bf16.msra.mxu0 0
      %1839 = vmatpush.bf16.msra.mxu0 %v1806
      %1840 = vmatpush.bf16.msra.mxu0 %v1805
      %1841 = vmatmul.bf16.gmra.mxu0 %v1810
      %v1842 = vpop.f32.mrf.mxu0
      %v1843 = vadd.f32 %v1795, %v1842
      %v1844 = vpop.f32.mrf.mxu0
      %v1845 = vadd.f32 %v1795, %v1844
      %1846 = vmatmul.bf16.gmra.mxu0 %v1813
      %v1847 = vpop.f32.mrf.mxu0
      %v1848 = vadd.f32 %v1795, %v1847
      %v1849 = vpop.f32.mrf.mxu0
      %v1850 = vadd.f32 %v1795, %v1849
      %1851 = vmatmul.bf16.gmra.mxu0 %v1816
      %v1852 = vpop.f32.mrf.mxu0
      %v1853 = vadd.f32 %v1795, %v1852
      %v1854 = vpop.f32.mrf.mxu0
      %v1855 = vadd.f32 %v1795, %v1854
      %1856 = vmatmul.bf16.gmra.mxu0 %v1819
      %v1857 = vpop.f32.mrf.mxu0
      %v1858 = vadd.f32 %v1795, %v1857
      %v1859 = vpop.f32.mrf.mxu0
      %v1860 = vadd.f32 %v1795, %v1859
      %1861 = vmatmul.bf16.gmra.mxu0 %v1822
      %v1862 = vpop.f32.mrf.mxu0
      %v1863 = vadd.f32 %v1795, %v1862
      %v1864 = vpop.f32.mrf.mxu0
      %v1865 = vadd.f32 %v1795, %v1864
      %1866 = vmatmul.bf16.gmra.mxu0 %v1825
      %v1867 = vpop.f32.mrf.mxu0
      %v1868 = vadd.f32 %v1795, %v1867
      %v1869 = vpop.f32.mrf.mxu0
      %v1870 = vadd.f32 %v1795, %v1869
      %1871 = vmatmul.bf16.gmra.mxu0 %v1828
      %v1872 = vpop.f32.mrf.mxu0
      %v1873 = vadd.f32 %v1795, %v1872
      %v1874 = vpop.f32.mrf.mxu0
      %v1875 = vadd.f32 %v1795, %v1874
      %1876 = vmatmul.bf16.gmra.mxu0 %v1831
      %v1877 = vpop.f32.mrf.mxu0
      %v1878 = vadd.f32 %v1795, %v1877
      %v1879 = vpop.f32.mrf.mxu0
      %1880 = vdwg.mxu0
      %1881 = vst [vmem:[%s379] sm:$0xff] %v1843
      %1882 = vst [vmem:[%s379 + $0x8] sm:$0xff] %v1845
      %1883 = vst [vmem:[%s379 + $0x10] sm:$0xff] %v1848
      %1884 = vst [vmem:[%s379 + $0x18] sm:$0xff] %v1850
      %1885 = vst [vmem:[%s379 + $0x20] sm:$0xff] %v1853
      %1886 = vst [vmem:[%s379 + $0x28] sm:$0xff] %v1855
      %1887 = vst [vmem:[%s379 + $0x30] sm:$0xff] %v1858
      %1888 = vst [vmem:[%s379 + $0x38] sm:$0xff] %v1860
      %1889 = vst [vmem:[%s379 + $0x40] sm:$0xff] %v1863
      %1890 = vst [vmem:[%s379 + $0x48] sm:$0xff] %v1865
      %1891 = vst [vmem:[%s379 + $0x50] sm:$0xff] %v1868
      %1892 = vst [vmem:[%s379 + $0x58] sm:$0xff] %v1870
      %1893 = vst [vmem:[%s379 + $0x60] sm:$0xff] %v1873
      %1894 = vst [vmem:[%s379 + $0x68] sm:$0xff] %v1875
      %1895 = vst [vmem:[%s379 + $0x70] sm:$0xff] %v1878
      %p1896 = scmp.lt.s32.totalorder %s21, 1
      %s1897 = scalar_select %p1896, %s21, 1
      %s1898 = smul.addr %s1897, 15
      %s1899 = smul.addr %s1898, 8
      %s1900 = scalar_lea.vmem %s10, %s1899
      // Predicated region
      $region61: #{depthwise_xcorr_forward.1} parent=59 // pred_check
        %p1901 = pneg %p259
      $region62: #{depthwise_xcorr_forward.1} parent=59 // pred_check_branch
        %1903 = sbr.rel (%p1901) target = $region64
      $region63: #{depthwise_xcorr_forward.1} parent=59 // pred_region
        _
      $region64: #{depthwise_xcorr_forward.1} parent=59 // pred_fallthru
        _
    $region60: #{depthwise_xcorr_forward.1} parent=5 // pred_fallthru
      _
    %p1904 = scmp.le.s32.totalorder 2, %s16
    // Predicated region
    $region65: #{depthwise_xcorr_forward.1} parent=5 // pred_check
      %p1905 = pneg %p1904
    $region66: #{depthwise_xcorr_forward.1} parent=5 // pred_check_branch
      %1907 = sbr.rel (%p1905) target = $region68
    $region67: #{depthwise_xcorr_forward.1} parent=5 // pred_region
      %s1908 = ssub.s32 %s16, 2
      // Predicated region
      $region69: #{depthwise_xcorr_forward.1} parent=67 // pred_check
        %p1909 = pneg %p265
      $region70: #{depthwise_xcorr_forward.1} parent=67 // pred_check_branch
        %1911 = sbr.rel (%p1909) target = $region72
      $region71: #{depthwise_xcorr_forward.1} parent=67 // pred_region
        %p1912 = scmp.lt.s32.totalorder %s22, 1
        %s1913 = scalar_select %p1912, %s22, 1
        %s1914 = smul.addr %s1913, 15
        %s1915 = smul.addr %s1914, 8
        %s1916 = scalar_lea.vmem %s10, %s1915
      $region72: #{depthwise_xcorr_forward.1} parent=67 // pred_fallthru
        _
    $region68: #{depthwise_xcorr_forward.1} parent=5 // pred_fallthru
      _
  $region6: #{depthwise_xcorr_forward.1} parent=0 // loop_footer
    %s20 = sadd.s32 1, %s16
  $region7: #{depthwise_xcorr_forward.1} parent=0 // loop_footer_branch
    %15 = sbr.rel target = $region3
  $region8: #{depthwise_xcorr_forward.1} parent=0 // loop_exit
    _

</llo_original>
